<compile_context>
chip_gen: v6e
topology: v6e:2x2x1
jax: 0.10.0
libtpu: 0.0.40
codegen_flags: <defaults>
</compile_context>

<pallas_src>
import functools

import jax
import jax.numpy as jnp
from jax.experimental import pallas as pl
from jax.experimental.pallas import tpu as pltpu


def _attention_kernel(x_ref, gamma_ref, beta_ref, wqkv_ref, wout_ref, o_ref,
                      *, heads, dim_head, eps):
    bt, n, d = x_ref.shape
    rows = bt * n
    inner = heads * dim_head
    cdt = wqkv_ref.dtype                    # MXU compute dtype (bf16 by default)

    # ---- LayerNorm (f32 statistics), gamma folded into the rsqrt scale ----
    x = x_ref[...].reshape(rows, d).astype(jnp.float32)
    mean = jnp.mean(x, axis=-1, keepdims=True)
    var = jnp.mean(jnp.square(x - mean), axis=-1, keepdims=True)
    g = gamma_ref[...].astype(jnp.float32)                    # (1, D)
    b = beta_ref[...].astype(jnp.float32)                     # (1, D)
    xn = ((x - mean) * (jax.lax.rsqrt(var + eps) * g) + b).astype(cdt)

    # ---- fused, lane-dense QKV projection: (rows, D) @ (D, 3*inner) ----
    # dim_head**-0.5 is already folded into the q columns of wqkv (wrapper).
    qkv = jnp.dot(xn, wqkv_ref[...],
                  preferred_element_type=jnp.float32).astype(cdt)   # (rows, 3*inner)

    # ---- per-head scaled-dot-product attention (heads unrolled in-kernel) ----
    head_outs = []
    for h in range(heads):
        lo = h * dim_head
        q_h = qkv[:, lo:lo + dim_head].reshape(bt, n, dim_head)
        k_h = qkv[:, inner + lo:inner + lo + dim_head].reshape(bt, n, dim_head)
        v_h = qkv[:, 2 * inner + lo:2 * inner + lo + dim_head].reshape(bt, n, dim_head)

        dots = jnp.einsum('bnd,bmd->bnm', q_h, k_h,
                          preferred_element_type=jnp.float32)       # (bt, N, N) f32
        dots = dots - jnp.max(dots, axis=-1, keepdims=True)
        e = jnp.exp(dots)
        attn = (e / jnp.sum(e, axis=-1, keepdims=True)).astype(cdt)
        o_h = jnp.einsum('bnm,bmd->bnd', attn, v_h,
                         preferred_element_type=jnp.float32)        # (bt, N, dh)
        head_outs.append(o_h.reshape(rows, dim_head).astype(cdt))

    # ---- single full-depth output projection: (rows, inner) @ (inner, D) ----
    head_out = jnp.concatenate(head_outs, axis=-1)                  # (rows, inner)
    out = jnp.dot(head_out, wout_ref[...],
                  preferred_element_type=jnp.float32)               # (rows, D) f32
    o_ref[...] = out.reshape(bt, n, d).astype(o_ref.dtype)          # lane-dense store


def attention_pallas(x, gamma, beta, w_qkv, w_out, *, heads, dim_head,
                     eps=1e-5, block_b=None, compute_dtype=jnp.bfloat16):
    B, N, D = x.shape
    inner = heads * dim_head
    assert w_qkv.shape == (D, 3 * inner)
    assert w_out.shape == (inner, D)

    if block_b is None:
        # v7x has 2 TensorCores -> keep >= 2 "parallel" batch blocks when possible;
        # on single-TC v5e/v6e the single extra grid step costs ~0.35us (negligible).
        block_b = B // 2 if (B % 2 == 0 and B >= 2) else B
    assert B % block_b == 0, "block_b must divide the batch size"
    bt = block_b

    # Fold the attention scale dim_head**-0.5 into the q columns of W_qkv and cast
    # the matmul operands to the MXU compute dtype (bf16) outside the kernel.
    scale = dim_head ** -0.5
    col_scale = jnp.concatenate(
        [jnp.full((inner,), scale, w_qkv.dtype),
         jnp.ones((2 * inner,), w_qkv.dtype)])
    w_qkv_c = (w_qkv * col_scale[None, :]).astype(compute_dtype)
    w_out_c = w_out.astype(compute_dtype)

    kernel = functools.partial(_attention_kernel, heads=heads,
                               dim_head=dim_head, eps=eps)

    return pl.pallas_call(
        kernel,
        out_shape=jax.ShapeDtypeStruct((B, N, D), x.dtype),
        grid=(B // bt,),
        in_specs=[
            pl.BlockSpec((bt, N, D), lambda b: (b, 0, 0)),        # x batch block
            pl.BlockSpec((1, D), lambda b: (0, 0)),               # gamma
            pl.BlockSpec((1, D), lambda b: (0, 0)),               # beta
            pl.BlockSpec((D, 3 * inner), lambda b: (0, 0)),       # fused W_qkv (bf16, q pre-scaled)
            pl.BlockSpec((inner, D), lambda b: (0, 0)),           # W_out (bf16)
        ],
        out_specs=pl.BlockSpec((bt, N, D), lambda b: (b, 0, 0)),
        compiler_params=pltpu.CompilerParams(
            dimension_semantics=("parallel",)),
    )(x, gamma, beta, w_qkv_c, w_out_c)


def attention_ref(x, gamma, beta, w_qkv, w_out, *, heads, dim_head, eps=1e-5):
    """Pure-JAX f32 reference matching the PyTorch forward."""
    B, N, D = x.shape
    mean = jnp.mean(x, axis=-1, keepdims=True)
    var = jnp.mean((x - mean) ** 2, axis=-1, keepdims=True)
    xn = (x - mean) / jnp.sqrt(var + eps) * gamma[0] + beta[0]
    qkv = xn @ w_qkv
    q, k, v = jnp.split(qkv, 3, axis=-1)

    def to_heads(t):
        return jnp.transpose(t.reshape(B, N, heads, dim_head), (0, 2, 1, 3))

    q, k, v = map(to_heads, (q, k, v))
    dots = jnp.einsum('bhnd,bhmd->bhnm', q, k) * (dim_head ** -0.5)
    attn = jax.nn.softmax(dots, axis=-1)
    out = jnp.einsum('bhnm,bhmd->bhnd', attn, v)
    out = jnp.transpose(out, (0, 2, 1, 3)).reshape(B, N, heads * dim_head)
    return out @ w_out


if __name__ == "__main__":
    B, N, D = 8, 16, 128
    heads, dim_head = 4, 32
    inner = heads * dim_head

    key = jax.random.PRNGKey(0)
    kx, kg, kb, kqkv, kout = jax.random.split(key, 5)

    x = jax.random.normal(kx, (B, N, D), dtype=jnp.float32)
    gamma = 1.0 + 0.1 * jax.random.normal(kg, (1, D), dtype=jnp.float32)
    beta = 0.1 * jax.random.normal(kb, (1, D), dtype=jnp.float32)
    w_qkv = jax.random.normal(kqkv, (D, 3 * inner), dtype=jnp.float32) * (D ** -0.5)
    w_out = jax.random.normal(kout, (inner, D), dtype=jnp.float32) * (inner ** -0.5)

    out = attention_pallas(x, gamma, beta, w_qkv, w_out,
                           heads=heads, dim_head=dim_head, block_b=4)
    out = jax.block_until_ready(out)

    ref = attention_ref(x, gamma, beta, w_qkv, w_out, heads=heads, dim_head=dim_head)
    assert out.shape == (B, N, D)
    # bf16 MXU operands (f32 accumulation) -> ~1e-2-level deviation vs the f32 reference.
    max_err = float(jnp.max(jnp.abs(out - ref)))
    assert jnp.allclose(out, ref, rtol=3e-2, atol=3e-2), max_err
    print("KERNEL_OK")
</pallas_src>

<mosaic_0001>
module attributes {stable_mosaic.version = 11 : i64} {
  func.func @_attention_kernel(%arg0: i32, %arg1: memref<4x16x128xf32, #tpu.memory_space<vmem>>, %arg2: memref<1x128xf32, #tpu.memory_space<vmem>>, %arg3: memref<1x128xf32, #tpu.memory_space<vmem>>, %arg4: memref<128x384xbf16, #tpu.memory_space<vmem>>, %arg5: memref<128x128xbf16, #tpu.memory_space<vmem>>, %arg6: memref<4x16x128xf32, #tpu.memory_space<vmem>>) attributes {dimension_semantics = [#tpu.dimension_semantics<parallel>], iteration_bounds = array<i64: 2>, scalar_prefetch = 0 : i64, scratch_operands = 0 : i64, tpu.core_type = #tpu.core_type<tc>, window_params = [{transform_indices = @transform_0, window_bounds = array<i64: 4, 16, 128>}, {pipeline_mode = #tpu.pipeline_mode<synchronous>, transform_indices = @transform_1, window_bounds = array<i64: 1, 128>}, {pipeline_mode = #tpu.pipeline_mode<synchronous>, transform_indices = @transform_2, window_bounds = array<i64: 1, 128>}, {pipeline_mode = #tpu.pipeline_mode<synchronous>, transform_indices = @transform_3, window_bounds = array<i64: 128, 384>}, {pipeline_mode = #tpu.pipeline_mode<synchronous>, transform_indices = @transform_4, window_bounds = array<i64: 128, 128>}, {transform_indices = @transform_5, window_bounds = array<i64: 4, 16, 128>}]} {
    %c0 = arith.constant 0 : index
    %c0_0 = arith.constant 0 : index
    %c0_1 = arith.constant 0 : index
    %0 = vector.load %arg1[%c0, %c0_0, %c0_1] : memref<4x16x128xf32, #tpu.memory_space<vmem>>, vector<4x16x128xf32>
    %1 = vector.shape_cast %0 : vector<4x16x128xf32> to vector<64x128xf32>
    %cst = arith.constant dense<0.000000e+00> : vector<64xf32>
    %2 = vector.multi_reduction <add>, %1, %cst [1] : vector<64x128xf32> to vector<64xf32>
    %3 = vector.shape_cast %2 : vector<64xf32> to vector<64x1xf32>
    %cst_2 = arith.constant 1.280000e+02 : f32
    %4 = vector.broadcast %cst_2 : f32 to vector<64x1xf32>
    %5 = arith.divf %3, %4 : vector<64x1xf32>
    %6 = vector.broadcast %5 : vector<64x1xf32> to vector<64x128xf32>
    %7 = arith.subf %1, %6 : vector<64x128xf32>
    %8 = arith.mulf %7, %7 : vector<64x128xf32>
    %cst_3 = arith.constant dense<0.000000e+00> : vector<64xf32>
    %9 = vector.multi_reduction <add>, %8, %cst_3 [1] : vector<64x128xf32> to vector<64xf32>
    %10 = vector.shape_cast %9 : vector<64xf32> to vector<64x1xf32>
    %cst_4 = arith.constant 1.280000e+02 : f32
    %11 = vector.broadcast %cst_4 : f32 to vector<64x1xf32>
    %12 = arith.divf %10, %11 : vector<64x1xf32>
    %c0_5 = arith.constant 0 : index
    %c0_6 = arith.constant 0 : index
    %13 = vector.load %arg2[%c0_5, %c0_6] : memref<1x128xf32, #tpu.memory_space<vmem>>, vector<1x128xf32>
    %c0_7 = arith.constant 0 : index
    %c0_8 = arith.constant 0 : index
    %14 = vector.load %arg3[%c0_7, %c0_8] : memref<1x128xf32, #tpu.memory_space<vmem>>, vector<1x128xf32>
    %15 = vector.broadcast %5 : vector<64x1xf32> to vector<64x128xf32>
    %16 = arith.subf %1, %15 : vector<64x128xf32>
    %cst_9 = arith.constant 9.99999974E-6 : f32
    %17 = vector.broadcast %cst_9 : f32 to vector<64x1xf32>
    %18 = arith.addf %12, %17 : vector<64x1xf32>
    %19 = math.rsqrt %18 : vector<64x1xf32>
    %20 = vector.broadcast %19 : vector<64x1xf32> to vector<64x128xf32>
    %21 = vector.broadcast %13 : vector<1x128xf32> to vector<64x128xf32>
    %22 = arith.mulf %20, %21 : vector<64x128xf32>
    %23 = arith.mulf %16, %22 : vector<64x128xf32>
    %24 = vector.broadcast %14 : vector<1x128xf32> to vector<64x128xf32>
    %25 = arith.addf %23, %24 : vector<64x128xf32>
    %26 = arith.truncf %25 : vector<64x128xf32> to vector<64x128xbf16>
    %c0_10 = arith.constant 0 : index
    %c0_11 = arith.constant 0 : index
    %27 = vector.load %arg4[%c0_10, %c0_11] : memref<128x384xbf16, #tpu.memory_space<vmem>>, vector<128x384xbf16>
    %cst_12 = arith.constant dense<0.000000e+00> : vector<64x384xf32>
    %28 = tpu.matmul %26, %27, %cst_12 {dimension_numbers = #tpu.dot_dimension_numbers<[1], [0], [0], [1], [0, 0, 1, 1], [], []>} : vector<64x128xbf16>, vector<128x384xbf16>, vector<64x384xf32> -> vector<64x384xf32>
    %29 = arith.truncf %28 : vector<64x384xf32> to vector<64x384xbf16>
    %30 = vector.extract_strided_slice %29 {offsets = [0, 0], sizes = [64, 32], strides = [1, 1]} : vector<64x384xbf16> to vector<64x32xbf16>
    %31 = vector.shape_cast %30 : vector<64x32xbf16> to vector<4x16x32xbf16>
    %32 = vector.extract_strided_slice %29 {offsets = [0, 128], sizes = [64, 32], strides = [1, 1]} : vector<64x384xbf16> to vector<64x32xbf16>
    %33 = vector.shape_cast %32 : vector<64x32xbf16> to vector<4x16x32xbf16>
    %34 = vector.extract_strided_slice %29 {offsets = [0, 256], sizes = [64, 32], strides = [1, 1]} : vector<64x384xbf16> to vector<64x32xbf16>
    %35 = vector.shape_cast %34 : vector<64x32xbf16> to vector<4x16x32xbf16>
    "tpu.trace_start"() <{level = 10 : i32, message = "bnd,bmd->bnm"}> : () -> ()
    %cst_13 = arith.constant dense<0.000000e+00> : vector<4x16x16xf32>
    %36 = tpu.matmul %31, %33, %cst_13 {dimension_numbers = #tpu.dot_dimension_numbers<[2], [2], [1], [1], [0, 0, 0, 1, 1, 1], [0], [0]>} : vector<4x16x32xbf16>, vector<4x16x32xbf16>, vector<4x16x16xf32> -> vector<4x16x16xf32>
    "tpu.trace_stop"() : () -> ()
    %cst_14 = arith.constant dense<0xFF800000> : vector<4x16xf32>
    %37 = vector.multi_reduction <maximumf>, %36, %cst_14 [2] : vector<4x16x16xf32> to vector<4x16xf32>
    %38 = vector.shape_cast %37 : vector<4x16xf32> to vector<4x16x1xf32>
    %39 = vector.broadcast %38 : vector<4x16x1xf32> to vector<4x16x16xf32>
    %40 = arith.subf %36, %39 : vector<4x16x16xf32>
    %41 = math.exp %40 : vector<4x16x16xf32>
    %cst_15 = arith.constant dense<0.000000e+00> : vector<4x16xf32>
    %42 = vector.multi_reduction <add>, %41, %cst_15 [2] : vector<4x16x16xf32> to vector<4x16xf32>
    %43 = vector.shape_cast %42 : vector<4x16xf32> to vector<4x16x1xf32>
    %44 = vector.broadcast %43 : vector<4x16x1xf32> to vector<4x16x16xf32>
    %45 = arith.divf %41, %44 : vector<4x16x16xf32>
    %46 = arith.truncf %45 : vector<4x16x16xf32> to vector<4x16x16xbf16>
    "tpu.trace_start"() <{level = 10 : i32, message = "bnm,bmd->bnd"}> : () -> ()
    %cst_16 = arith.constant dense<0.000000e+00> : vector<4x16x32xf32>
    %47 = tpu.matmul %46, %35, %cst_16 {dimension_numbers = #tpu.dot_dimension_numbers<[2], [1], [1], [2], [0, 0, 0, 1, 1, 2], [0], [0]>} : vector<4x16x16xbf16>, vector<4x16x32xbf16>, vector<4x16x32xf32> -> vector<4x16x32xf32>
    "tpu.trace_stop"() : () -> ()
    %48 = vector.shape_cast %47 : vector<4x16x32xf32> to vector<64x32xf32>
    %49 = arith.truncf %48 : vector<64x32xf32> to vector<64x32xbf16>
    %50 = vector.extract_strided_slice %29 {offsets = [0, 32], sizes = [64, 32], strides = [1, 1]} : vector<64x384xbf16> to vector<64x32xbf16>
    %51 = vector.shape_cast %50 : vector<64x32xbf16> to vector<4x16x32xbf16>
    %52 = vector.extract_strided_slice %29 {offsets = [0, 160], sizes = [64, 32], strides = [1, 1]} : vector<64x384xbf16> to vector<64x32xbf16>
    %53 = vector.shape_cast %52 : vector<64x32xbf16> to vector<4x16x32xbf16>
    %54 = vector.extract_strided_slice %29 {offsets = [0, 288], sizes = [64, 32], strides = [1, 1]} : vector<64x384xbf16> to vector<64x32xbf16>
    %55 = vector.shape_cast %54 : vector<64x32xbf16> to vector<4x16x32xbf16>
    "tpu.trace_start"() <{level = 10 : i32, message = "bnd,bmd->bnm"}> : () -> ()
    %cst_17 = arith.constant dense<0.000000e+00> : vector<4x16x16xf32>
    %56 = tpu.matmul %51, %53, %cst_17 {dimension_numbers = #tpu.dot_dimension_numbers<[2], [2], [1], [1], [0, 0, 0, 1, 1, 1], [0], [0]>} : vector<4x16x32xbf16>, vector<4x16x32xbf16>, vector<4x16x16xf32> -> vector<4x16x16xf32>
    "tpu.trace_stop"() : () -> ()
    %cst_18 = arith.constant dense<0xFF800000> : vector<4x16xf32>
    %57 = vector.multi_reduction <maximumf>, %56, %cst_18 [2] : vector<4x16x16xf32> to vector<4x16xf32>
    %58 = vector.shape_cast %57 : vector<4x16xf32> to vector<4x16x1xf32>
    %59 = vector.broadcast %58 : vector<4x16x1xf32> to vector<4x16x16xf32>
    %60 = arith.subf %56, %59 : vector<4x16x16xf32>
    %61 = math.exp %60 : vector<4x16x16xf32>
    %cst_19 = arith.constant dense<0.000000e+00> : vector<4x16xf32>
    %62 = vector.multi_reduction <add>, %61, %cst_19 [2] : vector<4x16x16xf32> to vector<4x16xf32>
    %63 = vector.shape_cast %62 : vector<4x16xf32> to vector<4x16x1xf32>
    %64 = vector.broadcast %63 : vector<4x16x1xf32> to vector<4x16x16xf32>
    %65 = arith.divf %61, %64 : vector<4x16x16xf32>
    %66 = arith.truncf %65 : vector<4x16x16xf32> to vector<4x16x16xbf16>
    "tpu.trace_start"() <{level = 10 : i32, message = "bnm,bmd->bnd"}> : () -> ()
    %cst_20 = arith.constant dense<0.000000e+00> : vector<4x16x32xf32>
    %67 = tpu.matmul %66, %55, %cst_20 {dimension_numbers = #tpu.dot_dimension_numbers<[2], [1], [1], [2], [0, 0, 0, 1, 1, 2], [0], [0]>} : vector<4x16x16xbf16>, vector<4x16x32xbf16>, vector<4x16x32xf32> -> vector<4x16x32xf32>
    "tpu.trace_stop"() : () -> ()
    %68 = vector.shape_cast %67 : vector<4x16x32xf32> to vector<64x32xf32>
    %69 = arith.truncf %68 : vector<64x32xf32> to vector<64x32xbf16>
    %70 = vector.extract_strided_slice %29 {offsets = [0, 64], sizes = [64, 32], strides = [1, 1]} : vector<64x384xbf16> to vector<64x32xbf16>
    %71 = vector.shape_cast %70 : vector<64x32xbf16> to vector<4x16x32xbf16>
    %72 = vector.extract_strided_slice %29 {offsets = [0, 192], sizes = [64, 32], strides = [1, 1]} : vector<64x384xbf16> to vector<64x32xbf16>
    %73 = vector.shape_cast %72 : vector<64x32xbf16> to vector<4x16x32xbf16>
    %74 = vector.extract_strided_slice %29 {offsets = [0, 320], sizes = [64, 32], strides = [1, 1]} : vector<64x384xbf16> to vector<64x32xbf16>
    %75 = vector.shape_cast %74 : vector<64x32xbf16> to vector<4x16x32xbf16>
    "tpu.trace_start"() <{level = 10 : i32, message = "bnd,bmd->bnm"}> : () -> ()
    %cst_21 = arith.constant dense<0.000000e+00> : vector<4x16x16xf32>
    %76 = tpu.matmul %71, %73, %cst_21 {dimension_numbers = #tpu.dot_dimension_numbers<[2], [2], [1], [1], [0, 0, 0, 1, 1, 1], [0], [0]>} : vector<4x16x32xbf16>, vector<4x16x32xbf16>, vector<4x16x16xf32> -> vector<4x16x16xf32>
    "tpu.trace_stop"() : () -> ()
    %cst_22 = arith.constant dense<0xFF800000> : vector<4x16xf32>
    %77 = vector.multi_reduction <maximumf>, %76, %cst_22 [2] : vector<4x16x16xf32> to vector<4x16xf32>
    %78 = vector.shape_cast %77 : vector<4x16xf32> to vector<4x16x1xf32>
    %79 = vector.broadcast %78 : vector<4x16x1xf32> to vector<4x16x16xf32>
    %80 = arith.subf %76, %79 : vector<4x16x16xf32>
    %81 = math.exp %80 : vector<4x16x16xf32>
    %cst_23 = arith.constant dense<0.000000e+00> : vector<4x16xf32>
    %82 = vector.multi_reduction <add>, %81, %cst_23 [2] : vector<4x16x16xf32> to vector<4x16xf32>
    %83 = vector.shape_cast %82 : vector<4x16xf32> to vector<4x16x1xf32>
    %84 = vector.broadcast %83 : vector<4x16x1xf32> to vector<4x16x16xf32>
    %85 = arith.divf %81, %84 : vector<4x16x16xf32>
    %86 = arith.truncf %85 : vector<4x16x16xf32> to vector<4x16x16xbf16>
    "tpu.trace_start"() <{level = 10 : i32, message = "bnm,bmd->bnd"}> : () -> ()
    %cst_24 = arith.constant dense<0.000000e+00> : vector<4x16x32xf32>
    %87 = tpu.matmul %86, %75, %cst_24 {dimension_numbers = #tpu.dot_dimension_numbers<[2], [1], [1], [2], [0, 0, 0, 1, 1, 2], [0], [0]>} : vector<4x16x16xbf16>, vector<4x16x32xbf16>, vector<4x16x32xf32> -> vector<4x16x32xf32>
    "tpu.trace_stop"() : () -> ()
    %88 = vector.shape_cast %87 : vector<4x16x32xf32> to vector<64x32xf32>
    %89 = arith.truncf %88 : vector<64x32xf32> to vector<64x32xbf16>
    %90 = vector.extract_strided_slice %29 {offsets = [0, 96], sizes = [64, 32], strides = [1, 1]} : vector<64x384xbf16> to vector<64x32xbf16>
    %91 = vector.shape_cast %90 : vector<64x32xbf16> to vector<4x16x32xbf16>
    %92 = vector.extract_strided_slice %29 {offsets = [0, 224], sizes = [64, 32], strides = [1, 1]} : vector<64x384xbf16> to vector<64x32xbf16>
    %93 = vector.shape_cast %92 : vector<64x32xbf16> to vector<4x16x32xbf16>
    %94 = vector.extract_strided_slice %29 {offsets = [0, 352], sizes = [64, 32], strides = [1, 1]} : vector<64x384xbf16> to vector<64x32xbf16>
    %95 = vector.shape_cast %94 : vector<64x32xbf16> to vector<4x16x32xbf16>
    "tpu.trace_start"() <{level = 10 : i32, message = "bnd,bmd->bnm"}> : () -> ()
    %cst_25 = arith.constant dense<0.000000e+00> : vector<4x16x16xf32>
    %96 = tpu.matmul %91, %93, %cst_25 {dimension_numbers = #tpu.dot_dimension_numbers<[2], [2], [1], [1], [0, 0, 0, 1, 1, 1], [0], [0]>} : vector<4x16x32xbf16>, vector<4x16x32xbf16>, vector<4x16x16xf32> -> vector<4x16x16xf32>
    "tpu.trace_stop"() : () -> ()
    %cst_26 = arith.constant dense<0xFF800000> : vector<4x16xf32>
    %97 = vector.multi_reduction <maximumf>, %96, %cst_26 [2] : vector<4x16x16xf32> to vector<4x16xf32>
    %98 = vector.shape_cast %97 : vector<4x16xf32> to vector<4x16x1xf32>
    %99 = vector.broadcast %98 : vector<4x16x1xf32> to vector<4x16x16xf32>
    %100 = arith.subf %96, %99 : vector<4x16x16xf32>
    %101 = math.exp %100 : vector<4x16x16xf32>
    %cst_27 = arith.constant dense<0.000000e+00> : vector<4x16xf32>
    %102 = vector.multi_reduction <add>, %101, %cst_27 [2] : vector<4x16x16xf32> to vector<4x16xf32>
    %103 = vector.shape_cast %102 : vector<4x16xf32> to vector<4x16x1xf32>
    %104 = vector.broadcast %103 : vector<4x16x1xf32> to vector<4x16x16xf32>
    %105 = arith.divf %101, %104 : vector<4x16x16xf32>
    %106 = arith.truncf %105 : vector<4x16x16xf32> to vector<4x16x16xbf16>
    "tpu.trace_start"() <{level = 10 : i32, message = "bnm,bmd->bnd"}> : () -> ()
    %cst_28 = arith.constant dense<0.000000e+00> : vector<4x16x32xf32>
    %107 = tpu.matmul %106, %95, %cst_28 {dimension_numbers = #tpu.dot_dimension_numbers<[2], [1], [1], [2], [0, 0, 0, 1, 1, 2], [0], [0]>} : vector<4x16x16xbf16>, vector<4x16x32xbf16>, vector<4x16x32xf32> -> vector<4x16x32xf32>
    "tpu.trace_stop"() : () -> ()
    %108 = vector.shape_cast %107 : vector<4x16x32xf32> to vector<64x32xf32>
    %109 = arith.truncf %108 : vector<64x32xf32> to vector<64x32xbf16>
    %110 = tpu.concatenate %49, %69, %89, %109 in 1 : vector<64x32xbf16>, vector<64x32xbf16>, vector<64x32xbf16>, vector<64x32xbf16> -> vector<64x128xbf16>
    %c0_29 = arith.constant 0 : index
    %c0_30 = arith.constant 0 : index
    %111 = vector.load %arg5[%c0_29, %c0_30] : memref<128x128xbf16, #tpu.memory_space<vmem>>, vector<128x128xbf16>
    %cst_31 = arith.constant dense<0.000000e+00> : vector<64x128xf32>
    %112 = tpu.matmul %110, %111, %cst_31 {dimension_numbers = #tpu.dot_dimension_numbers<[1], [0], [0], [1], [0, 0, 1, 1], [], []>} : vector<64x128xbf16>, vector<128x128xbf16>, vector<64x128xf32> -> vector<64x128xf32>
    %113 = vector.shape_cast %112 : vector<64x128xf32> to vector<4x16x128xf32>
    %c0_32 = arith.constant 0 : index
    %c0_33 = arith.constant 0 : index
    %c0_34 = arith.constant 0 : index
    %114 = vector.load %arg6[%c0_32, %c0_33, %c0_34] : memref<4x16x128xf32, #tpu.memory_space<vmem>>, vector<4x16x128xf32>
    tpu.vector_store %arg6[%c0_32, %c0_33, %c0_34], %113 {strides = array<i32>} : memref<4x16x128xf32, #tpu.memory_space<vmem>>, vector<4x16x128xf32>,
    return
  }
  func.func @transform_0(%arg0: i32) -> (i32, i32, i32) {
    %c0_i32 = arith.constant 0 : i32
    %c0_i32_0 = arith.constant 0 : i32
    %c0_i32_1 = arith.constant 0 : i32
    return %arg0, %c0_i32, %c0_i32_0 : i32, i32, i32
  }
  func.func @transform_1(%arg0: i32) -> (i32, i32) {
    %c0_i32 = arith.constant 0 : i32
    %c0_i32_0 = arith.constant 0 : i32
    %c0_i32_1 = arith.constant 0 : i32
    return %c0_i32, %c0_i32_0 : i32, i32
  }
  func.func @transform_2(%arg0: i32) -> (i32, i32) {
    %c0_i32 = arith.constant 0 : i32
    %c0_i32_0 = arith.constant 0 : i32
    %c0_i32_1 = arith.constant 0 : i32
    return %c0_i32, %c0_i32_0 : i32, i32
  }
  func.func @transform_3(%arg0: i32) -> (i32, i32) {
    %c0_i32 = arith.constant 0 : i32
    %c0_i32_0 = arith.constant 0 : i32
    %c0_i32_1 = arith.constant 0 : i32
    return %c0_i32, %c0_i32_0 : i32, i32
  }
  func.func @transform_4(%arg0: i32) -> (i32, i32) {
    %c0_i32 = arith.constant 0 : i32
    %c0_i32_0 = arith.constant 0 : i32
    %c0_i32_1 = arith.constant 0 : i32
    return %c0_i32, %c0_i32_0 : i32, i32
  }
  func.func @transform_5(%arg0: i32) -> (i32, i32, i32) {
    %c0_i32 = arith.constant 0 : i32
    %c0_i32_0 = arith.constant 0 : i32
    %c0_i32_1 = arith.constant 0 : i32
    return %arg0, %c0_i32, %c0_i32_0 : i32, i32, i32
  }
}

</mosaic_0001>

<llo_original>
// kernel: tpu_custom_call.1
$region0: #{tpu_custom_call.1}
  #allocation0 [shape = 'u32[]', space=smem, size = 0x4, offset = 0x4, fixed_abs, tag = 'smem constant byte address 0x4 - core index']
  #allocation1 [shape = 'u32[144,128]{1,0:T(1,128)}', space=vmem, size = 0x12000, scoped, tag = 'internal scratch']
  %s0 = inlined_call_operand.hbm [shape: f32[8,16,128], index: 0, kind: input, shape index: {}]
  %s1 = inlined_call_operand.vmem [shape: f32[1,128], index: 1, kind: input, shape index: {}]
  %s2 = inlined_call_operand.vmem [shape: f32[1,128], index: 2, kind: input, shape index: {}]
  %s3 = inlined_call_operand.hbm [shape: bf16[128,384], index: 3, kind: input, shape index: {}]
  %s4 = inlined_call_operand.hbm [shape: bf16[128,128], index: 4, kind: input, shape index: {}]
  %s5 = inlined_call_operand.hbm [shape: f32[8,16,128], index: 5, kind: output, shape index: {}]
  %s6 = sld [smem:[#allocation0]]
  $region65: #{tpu_custom_call.1} parent=0
    _
  %s8 = ssub.s32 1, %s6
  %s9 = scalar_select 0, %s8, %s6
  $region1: #{tpu_custom_call.1} parent=0
    #allocation2 [shape = 'u8[65536]{0}', space=vmem, size = 0x10000, scoped, tag = 'input window, operand 0']
    #allocation3 [shape = 's32[2]{0}', space=sflag, size = 0x8, scoped, tag = 'scoped memory for tpu_custom_call.1']
    #allocation4 [shape = 's32[2]{0}', space=sflag, size = 0x8, scoped, tag = 'scoped memory for tpu_custom_call.1']
    #allocation5 [shape = 'u8[98304]{0}', space=vmem, size = 0x18000, scoped, tag = 'input window, operand 3, single buffered']
    #allocation6 [shape = 's32[1]{0}', space=sflag, size = 0x4, scoped, tag = 'scoped memory for tpu_custom_call.1']
    #allocation7 [shape = 'u8[32768]{0}', space=vmem, size = 0x8000, scoped, tag = 'input window, operand 4, single buffered']
    #allocation8 [shape = 'u8[65536]{0}', space=vmem, size = 0x10000, scoped, tag = 'output window, operand 0']
    %10 = vsyncpa [#allocation3], 0
    %s11 = scalar_lea.sflag [#allocation3], 1
    %12 = vsyncpa %s11, 0
    %13 = vsyncpa [#allocation6], 0
    %14 = vsyncpa [#allocation4], 0
    %s15 = scalar_lea.sflag [#allocation4], 1
    %16 = vsyncpa %s15, 0
    loop: start=0, step=1, limit=4
    $region2: #{tpu_custom_call.1} parent=1 // loop_pre_header
      _
    $region3: #{tpu_custom_call.1} parent=1 // loop_header
      %s18 = sphi 0, %s22
      %p19 = scmp.ge.s32.totalorder %s18, 4
      %s28 = sphi 0, %s30
      %s31 = sphi 0, %s28
      %s32 = sphi 0, %s31
      %s48 = sphi 0, %s32
      %s52 = sphi 0, %s52
      %s54 = sphi 0, %s52
      %s55 = sphi 0, %s54
      %s69 = sphi 0, %s55
      %s73 = sphi 0, %s73
      %s75 = sphi 0, %s73
      %s76 = sphi 0, %s75
      %s90 = sphi 0, %s76
      %s94 = sphi 0, %s94
      %s96 = sphi 0, %s94
      %s97 = sphi 0, %s96
      %s111 = sphi 0, %s97
      %s115 = sphi 0, %s115
      %s117 = sphi 0, %s115
      %s118 = sphi 0, %s117
      %s132 = sphi 0, %s118
      %s138 = sphi 0, %s140
      %s141 = sphi 0, %s138
      %s142 = sphi 0, %s141
      %s158 = sphi 0, %s142
    $region4: #{tpu_custom_call.1} parent=1 // loop_header_branch
      %21 = sbr.rel (%p19) target = $region8
    $region5: #{tpu_custom_call.1} parent=1 // loop_body
      %s23 = ssub.s32 %s18, 1
      %s24 = ssub.s32 %s18, 2
      %s25 = sadd.s32 %s18, 1
      %s26 = ssub.s32 %s18, %s25
      %p27 = scmp.eq.s32.totalorder %s26, 0
      %s29 = sadd.s32 %s28, 1
      %s30 = scalar_select %p27, %s28, %s29
      %p33 = pneg %p27
      %p34 = scmp.eq.s32.totalorder %s18, 1
      %p35 = por %p33, %p34
      %p36 = scmp.ne.s32.totalorder %s28, %s31
      %p37 = scmp.eq.s32.totalorder %s18, 0
      %p38 = por %p36, %p37
      %p39 = scmp.ne.s32.totalorder %s28, %s31
      %p40 = scmp.eq.s32.totalorder %s23, 1
      %p41 = por %p39, %p40
      %p42 = scmp.ne.s32.totalorder %s31, %s32
      %p43 = scmp.eq.s32.totalorder %s23, 0
      %p44 = por %p42, %p43
      %p45 = scmp.ne.s32.totalorder %s31, %s32
      %p46 = scmp.eq.s32.totalorder %s24, 1
      %p47 = por %p45, %p46
      %p49 = scmp.ne.s32.totalorder %s32, %s48
      %p50 = scmp.eq.s32.totalorder %s24, 0
      %p51 = por %p49, %p50
      %s53 = sadd.s32 %s52, 1
      %p56 = scmp.eq.s32.totalorder %s18, 1
      %p57 = scmp.ne.s32.totalorder %s52, %s54
      %p58 = scmp.eq.s32.totalorder %s18, 0
      %p59 = por %p57, %p58
      %p60 = scmp.ne.s32.totalorder %s52, %s54
      %p61 = scmp.eq.s32.totalorder %s23, 1
      %p62 = por %p60, %p61
      %p63 = scmp.ne.s32.totalorder %s54, %s55
      %p64 = scmp.eq.s32.totalorder %s23, 0
      %p65 = por %p63, %p64
      %p66 = scmp.ne.s32.totalorder %s54, %s55
      %p67 = scmp.eq.s32.totalorder %s24, 1
      %p68 = por %p66, %p67
      %p70 = scmp.ne.s32.totalorder %s55, %s69
      %p71 = scmp.eq.s32.totalorder %s24, 0
      %p72 = por %p70, %p71
      %s74 = sadd.s32 %s73, 1
      %p77 = scmp.eq.s32.totalorder %s18, 1
      %p78 = scmp.ne.s32.totalorder %s73, %s75
      %p79 = scmp.eq.s32.totalorder %s18, 0
      %p80 = por %p78, %p79
      %p81 = scmp.ne.s32.totalorder %s73, %s75
      %p82 = scmp.eq.s32.totalorder %s23, 1
      %p83 = por %p81, %p82
      %p84 = scmp.ne.s32.totalorder %s75, %s76
      %p85 = scmp.eq.s32.totalorder %s23, 0
      %p86 = por %p84, %p85
      %p87 = scmp.ne.s32.totalorder %s75, %s76
      %p88 = scmp.eq.s32.totalorder %s24, 1
      %p89 = por %p87, %p88
      %p91 = scmp.ne.s32.totalorder %s76, %s90
      %p92 = scmp.eq.s32.totalorder %s24, 0
      %p93 = por %p91, %p92
      %s95 = sadd.s32 %s94, 1
      %p98 = scmp.eq.s32.totalorder %s18, 1
      %p99 = scmp.ne.s32.totalorder %s94, %s96
      %p100 = scmp.eq.s32.totalorder %s18, 0
      %p101 = por %p99, %p100
      %p102 = scmp.ne.s32.totalorder %s94, %s96
      %p103 = scmp.eq.s32.totalorder %s23, 1
      %p104 = por %p102, %p103
      %p105 = scmp.ne.s32.totalorder %s96, %s97
      %p106 = scmp.eq.s32.totalorder %s23, 0
      %p107 = por %p105, %p106
      %p108 = scmp.ne.s32.totalorder %s96, %s97
      %p109 = scmp.eq.s32.totalorder %s24, 1
      %p110 = por %p108, %p109
      %p112 = scmp.ne.s32.totalorder %s97, %s111
      %p113 = scmp.eq.s32.totalorder %s24, 0
      %p114 = por %p112, %p113
      %s116 = sadd.s32 %s115, 1
      %p119 = scmp.eq.s32.totalorder %s18, 1
      %p120 = scmp.ne.s32.totalorder %s115, %s117
      %p121 = scmp.eq.s32.totalorder %s18, 0
      %p122 = por %p120, %p121
      %p123 = scmp.ne.s32.totalorder %s115, %s117
      %p124 = scmp.eq.s32.totalorder %s23, 1
      %p125 = por %p123, %p124
      %p126 = scmp.ne.s32.totalorder %s117, %s118
      %p127 = scmp.eq.s32.totalorder %s23, 0
      %p128 = por %p126, %p127
      %p129 = scmp.ne.s32.totalorder %s117, %s118
      %p130 = scmp.eq.s32.totalorder %s24, 1
      %p131 = por %p129, %p130
      %p133 = scmp.ne.s32.totalorder %s118, %s132
      %p134 = scmp.eq.s32.totalorder %s24, 0
      %p135 = por %p133, %p134
      %s136 = ssub.s32 %s18, %s25
      %p137 = scmp.eq.s32.totalorder %s136, 0
      %s139 = sadd.s32 %s138, 1
      %s140 = scalar_select %p137, %s138, %s139
      %p143 = pneg %p137
      %p144 = scmp.eq.s32.totalorder %s18, 1
      %p145 = por %p143, %p144
      %p146 = scmp.ne.s32.totalorder %s138, %s141
      %p147 = scmp.eq.s32.totalorder %s18, 0
      %p148 = por %p146, %p147
      %p149 = scmp.ne.s32.totalorder %s138, %s141
      %p150 = scmp.eq.s32.totalorder %s23, 1
      %p151 = por %p149, %p150
      %p152 = scmp.ne.s32.totalorder %s141, %s142
      %p153 = scmp.eq.s32.totalorder %s23, 0
      %p154 = por %p152, %p153
      %p155 = scmp.ne.s32.totalorder %s141, %s142
      %p156 = scmp.eq.s32.totalorder %s24, 1
      %p157 = por %p155, %p156
      %p159 = scmp.ne.s32.totalorder %s142, %s158
      %p160 = scmp.eq.s32.totalorder %s24, 0
      %p161 = por %p159, %p160
      %p162 = scmp.le.s32.totalorder 1, %s18
      %p163 = scmp.lt.s32.totalorder %s18, 3
      %p164 = pnand %p162, %p163
      %p165 = pneg %p164
      // Predicated region
      $region9: #{tpu_custom_call.1} parent=5 // pred_check
        _
      $region10: #{tpu_custom_call.1} parent=5 // pred_check_branch
        %167 = sbr.rel (%p164) target = $region12
      $region11: #{tpu_custom_call.1} parent=5 // pred_region
        %s168 = ssub.s32 %s18, 1
        // Predicated region
        $region13: #{tpu_custom_call.1} parent=11 // pred_check
          %p169 = pneg %p65
        $region14: #{tpu_custom_call.1} parent=11 // pred_check_branch
          %171 = sbr.rel (%p169) target = $region16
        $region15: #{tpu_custom_call.1} parent=11 // pred_region
          _
        $region16: #{tpu_custom_call.1} parent=11 // pred_fallthru
          _
        // Predicated region
        $region17: #{tpu_custom_call.1} parent=11 // pred_check
          %p172 = pneg %p86
        $region18: #{tpu_custom_call.1} parent=11 // pred_check_branch
          %174 = sbr.rel (%p172) target = $region20
        $region19: #{tpu_custom_call.1} parent=11 // pred_region
          _
        $region20: #{tpu_custom_call.1} parent=11 // pred_fallthru
          _
        // Predicated region
        $region21: #{tpu_custom_call.1} parent=11 // pred_check
          %p175 = pneg %p107
        $region22: #{tpu_custom_call.1} parent=11 // pred_check_branch
          %177 = sbr.rel (%p175) target = $region24
        $region23: #{tpu_custom_call.1} parent=11 // pred_region
          %s179 = ssub.s32 3072, 3072
          %180 = vsyncadd [#allocation6], %s179
          %s181 = sshll.u32 [#allocation5], 4
          %s182 = int_to_ptr.vmem [resolvable:$true] %s181
          %187 = dma.hbm_to_vmem [thread:$0]  %s3, 3072, %s182, [#allocation6], 192, 192, 12
        $region24: #{tpu_custom_call.1} parent=11 // pred_fallthru
          _
        // Predicated region
        $region25: #{tpu_custom_call.1} parent=11 // pred_check
          %p188 = pneg %p128
        $region26: #{tpu_custom_call.1} parent=11 // pred_check_branch
          %190 = sbr.rel (%p188) target = $region28
        $region27: #{tpu_custom_call.1} parent=11 // pred_region
          %s192 = ssub.s32 1024, 1024
          %193 = vsyncadd [#allocation6], %s192
          %s194 = sshll.u32 [#allocation7], 4
          %s195 = int_to_ptr.vmem [resolvable:$true] %s194
          %200 = dma.hbm_to_vmem [thread:$0]  %s4, 1024, %s195, [#allocation6], 64, 64, 4
        $region28: #{tpu_custom_call.1} parent=11 // pred_fallthru
          _
      $region12: #{tpu_custom_call.1} parent=5 // pred_fallthru
        _
      %p201 = scmp.lt.s32.totalorder %s18, 2
      // Predicated region
      $region29: #{tpu_custom_call.1} parent=5 // pred_check
        %p202 = pneg %p201
      $region30: #{tpu_custom_call.1} parent=5 // pred_check_branch
        %204 = sbr.rel (%p202) target = $region32
      $region31: #{tpu_custom_call.1} parent=5 // pred_region
        // Predicated region
        $region33: #{tpu_custom_call.1} parent=31 // pred_check
          %p205 = pneg %p38
        $region34: #{tpu_custom_call.1} parent=31 // pred_check_branch
          %207 = sbr.rel (%p205) target = $region36
        $region35: #{tpu_custom_call.1} parent=31 // pred_region
          %s208 = sand.u32 %s28, 1
          %s209 = scalar_lea.sflag [#allocation3], %s208
          %s210 = sand.u32 %s28, 1
          %s211 = smul.addr %s210, 64
          %s212 = scalar_lea.vmem [#allocation2], %s211
          %s213 = smul.u32 4, %s18
          %s215 = ssub.s32 1024, 1024
          %216 = vsyncadd %s209, %s215
          %s217 = smul.addr %s213, 2
          %s218 = smul.addr %s217, 128
          %s219 = scalar_lea.hbm %s0, %s218
          %s220 = sshll.u32 %s212, 4
          %s221 = int_to_ptr.vmem [resolvable:$true] %s220
          %226 = dma.hbm_to_vmem [thread:$0]  %s219, 1024, %s221, %s209, 128, 128, 8
        $region36: #{tpu_custom_call.1} parent=31 // pred_fallthru
          _
      $region32: #{tpu_custom_call.1} parent=5 // pred_fallthru
        _
      %p227 = scmp.le.s32.totalorder 1, %s18
      %p228 = scmp.lt.s32.totalorder %s18, 3
      %p229 = pnand %p227, %p228
      %p230 = pneg %p229
      // Predicated region
      $region37: #{tpu_custom_call.1} parent=5 // pred_check
        _
      $region38: #{tpu_custom_call.1} parent=5 // pred_check_branch
        %232 = sbr.rel (%p229) target = $region40
      $region39: #{tpu_custom_call.1} parent=5 // pred_region
        %s233 = ssub.s32 %s18, 1
        %s234 = sand.u32 %s31, 1
        %s235 = scalar_lea.sflag [#allocation3], %s234
        %s236 = sand.u32 %s31, 1
        %s237 = smul.addr %s236, 64
        %s238 = scalar_lea.vmem [#allocation2], %s237
        // Predicated region
        $region41: #{tpu_custom_call.1} parent=39 // pred_check
          %p239 = pneg %p44
        $region42: #{tpu_custom_call.1} parent=39 // pred_check_branch
          %241 = sbr.rel (%p239) target = $region44
        $region43: #{tpu_custom_call.1} parent=39 // pred_region
          %242 = dma.done %s235, 1024
        $region44: #{tpu_custom_call.1} parent=39 // pred_fallthru
          _
        // Predicated region
        $region45: #{tpu_custom_call.1} parent=39 // pred_check
          %p243 = pneg %p107
        $region46: #{tpu_custom_call.1} parent=39 // pred_check_branch
          %245 = sbr.rel (%p243) target = $region48
        $region47: #{tpu_custom_call.1} parent=39 // pred_region
          %246 = dma.done [#allocation6], 3072
        $region48: #{tpu_custom_call.1} parent=39 // pred_fallthru
          _
        // Predicated region
        $region49: #{tpu_custom_call.1} parent=39 // pred_check
          %p247 = pneg %p128
        $region50: #{tpu_custom_call.1} parent=39 // pred_check_branch
          %249 = sbr.rel (%p247) target = $region52
        $region51: #{tpu_custom_call.1} parent=39 // pred_region
          %250 = dma.done [#allocation6], 1024
        $region52: #{tpu_custom_call.1} parent=39 // pred_fallthru
          _
        %s251 = sand.u32 %s31, 1
        %s252 = scalar_lea.sflag [#allocation3], %s251
        %s253 = sand.u32 %s31, 1
        %s254 = smul.addr %s253, 64
        %s255 = scalar_lea.vmem [#allocation2], %s254
        %p256 = pneg %p44
        %p257 = pneg %p41
        %p258 = pneg %p65
        %p259 = pneg %p62
        %p260 = pneg %p86
        %p261 = pneg %p83
        %p262 = pneg %p107
        %p263 = pneg %p104
        %p264 = pneg %p128
        %p265 = pneg %p125
        %p266 = pneg %p154
        %p267 = pneg %p151
        %s268 = sand.u32 %s141, 1
        %s269 = scalar_lea.sflag [#allocation4], %s268
        %s270 = sand.u32 %s141, 1
        %s271 = smul.addr %s270, 64
        %s272 = scalar_lea.vmem [#allocation8], %s271
        %s273 = smul.u32 4, %s23
        %s274 = smul.u32 4, %s23
        %v276 = vld [vmem:[%s238] sm:$0xff]
        %v277 = vld [vmem:[%s238 + $0x8] sm:$0xff]
        %v278 = vld [vmem:[%s238 + $0x10] sm:$0xff]
        %v279 = vld [vmem:[%s238 + $0x18] sm:$0xff]
        %v280 = vld [vmem:[%s238 + $0x20] sm:$0xff]
        %v281 = vld [vmem:[%s238 + $0x28] sm:$0xff]
        %v282 = vld [vmem:[%s238 + $0x30] sm:$0xff]
        %v283 = vld [vmem:[%s238 + $0x38] sm:$0xff]
        %284 = vadd.xlane.f32.xlu0 %v276
        %v285 = vpop.xlane.xlu0 %284
        %286 = vadd.xlane.f32.xlu0 %v277
        %v287 = vpop.xlane.xlu0 %286
        %288 = vadd.xlane.f32.xlu0 %v278
        %v289 = vpop.xlane.xlu0 %288
        %290 = vadd.xlane.f32.xlu0 %v279
        %v291 = vpop.xlane.xlu0 %290
        %292 = vadd.xlane.f32.xlu0 %v280
        %v293 = vpop.xlane.xlu0 %292
        %294 = vadd.xlane.f32.xlu0 %v281
        %v295 = vpop.xlane.xlu0 %294
        %296 = vadd.xlane.f32.xlu0 %v282
        %v297 = vpop.xlane.xlu0 %296
        %298 = vadd.xlane.f32.xlu0 %v283
        %v299 = vpop.xlane.xlu0 %298
        %v300 = vrcp.pop 128.0
        %v301 = vmul.f32 %v285, %v300
        %v302 = vmul.f32 %v287, %v300
        %v303 = vmul.f32 %v289, %v300
        %v304 = vmul.f32 %v291, %v300
        %v305 = vmul.f32 %v293, %v300
        %v306 = vmul.f32 %v295, %v300
        %v307 = vmul.f32 %v297, %v300
        %v308 = vmul.f32 %v299, %v300
        %v309 = vsub.f32 %v276, %v301
        %v310 = vsub.f32 %v277, %v302
        %v311 = vsub.f32 %v278, %v303
        %v312 = vsub.f32 %v279, %v304
        %v313 = vsub.f32 %v280, %v305
        %v314 = vsub.f32 %v281, %v306
        %v315 = vsub.f32 %v282, %v307
        %v316 = vsub.f32 %v283, %v308
        %v317 = vmul.f32 %v309, %v309
        %v318 = vmul.f32 %v310, %v310
        %v319 = vmul.f32 %v311, %v311
        %v320 = vmul.f32 %v312, %v312
        %v321 = vmul.f32 %v313, %v313
        %v322 = vmul.f32 %v314, %v314
        %v323 = vmul.f32 %v315, %v315
        %v324 = vmul.f32 %v316, %v316
        %325 = vadd.xlane.f32.xlu0 %v317
        %v326 = vpop.xlane.xlu0 %325
        %327 = vadd.xlane.f32.xlu0 %v318
        %v328 = vpop.xlane.xlu0 %327
        %329 = vadd.xlane.f32.xlu0 %v319
        %v330 = vpop.xlane.xlu0 %329
        %331 = vadd.xlane.f32.xlu0 %v320
        %v332 = vpop.xlane.xlu0 %331
        %333 = vadd.xlane.f32.xlu0 %v321
        %v334 = vpop.xlane.xlu0 %333
        %335 = vadd.xlane.f32.xlu0 %v322
        %v336 = vpop.xlane.xlu0 %335
        %337 = vadd.xlane.f32.xlu0 %v323
        %v338 = vpop.xlane.xlu0 %337
        %339 = vadd.xlane.f32.xlu0 %v324
        %v340 = vpop.xlane.xlu0 %339
        %v341 = vmul.f32 %v326, %v300
        %v342 = vmul.f32 %v328, %v300
        %v343 = vmul.f32 %v330, %v300
        %v344 = vmul.f32 %v332, %v300
        %v345 = vmul.f32 %v334, %v300
        %v346 = vmul.f32 %v336, %v300
        %v347 = vmul.f32 %v338, %v300
        %v348 = vmul.f32 %v340, %v300
        %v349 = vld [vmem:[%s1] sm:$0x1]
        %v350 = vld [vmem:[%s2] sm:$0x1]
        %v351 = vadd.f32 %v341, 1e-05
        %v352 = vadd.f32 %v342, 1e-05
        %v353 = vadd.f32 %v343, 1e-05
        %v354 = vadd.f32 %v344, 1e-05
        %v355 = vadd.f32 %v345, 1e-05
        %v356 = vadd.f32 %v346, 1e-05
        %v357 = vadd.f32 %v347, 1e-05
        %v358 = vadd.f32 %v348, 1e-05
        %v359 = vrsqrt.pop %v351
        %v360 = vrsqrt.pop %v352
        %v361 = vrsqrt.pop %v353
        %v362 = vrsqrt.pop %v354
        %v363 = vrsqrt.pop %v355
        %v364 = vrsqrt.pop %v356
        %v365 = vrsqrt.pop %v357
        %v366 = vrsqrt.pop %v358
        %v368 = vlaneseq
        %v369 = vshrl.u32 %v368, 7
        %v370 = vsub.s32 0, %v369
        %v371 = vrot.slane %v349, %v370
        %v373 = vmul.f32 %v359, %v371
        %v374 = vmul.f32 %v360, %v371
        %v375 = vmul.f32 %v361, %v371
        %v376 = vmul.f32 %v362, %v371
        %v377 = vmul.f32 %v363, %v371
        %v378 = vmul.f32 %v364, %v371
        %v379 = vmul.f32 %v365, %v371
        %v380 = vmul.f32 %v366, %v371
        %v381 = vmul.f32 %v309, %v373
        %v382 = vmul.f32 %v310, %v374
        %v383 = vmul.f32 %v311, %v375
        %v384 = vmul.f32 %v312, %v376
        %v385 = vmul.f32 %v313, %v377
        %v386 = vmul.f32 %v314, %v378
        %v387 = vmul.f32 %v315, %v379
        %v388 = vmul.f32 %v316, %v380
        %v390 = vlaneseq
        %v391 = vshrl.u32 %v390, 7
        %v392 = vsub.s32 0, %v391
        %v393 = vrot.slane %v350, %v392
        %v395 = vadd.f32 %v381, %v393
        %v396 = vadd.f32 %v382, %v393
        %v397 = vadd.f32 %v383, %v393
        %v398 = vadd.f32 %v384, %v393
        %v399 = vadd.f32 %v385, %v393
        %v400 = vadd.f32 %v386, %v393
        %v401 = vadd.f32 %v387, %v393
        %v402 = vadd.f32 %v388, %v393
        %v403 = vpack.c.bf16 %v396, %v395
        %v404 = vpack.c.bf16 %v398, %v397
        %v405 = vpack.c.bf16 %v400, %v399
        %v406 = vpack.c.bf16 %v402, %v401
        %v407 = vld [vmem:[#allocation5] sm:$0xff]
        %v408 = vld [vmem:[#allocation5 + $0x8] sm:$0xf]
        %v409 = vld [vmem:[#allocation5 + $0xc] sm:$0xff]
        %v410 = vld [vmem:[#allocation5 + $0x14] sm:$0xf]
        %v411 = vld [vmem:[#allocation5 + $0x18] sm:$0xff]
        %v412 = vld [vmem:[#allocation5 + $0x20] sm:$0xf]
        %v413 = vld [vmem:[#allocation5 + $0x24] sm:$0xff]
        %v414 = vld [vmem:[#allocation5 + $0x2c] sm:$0xf]
        %v415 = vld [vmem:[#allocation5 + $0x30] sm:$0xff]
        %v416 = vld [vmem:[#allocation5 + $0x38] sm:$0xf]
        %v417 = vld [vmem:[#allocation5 + $0x3c] sm:$0xff]
        %v418 = vld [vmem:[#allocation5 + $0x44] sm:$0xf]
        %v419 = vld [vmem:[#allocation5 + $0x48] sm:$0xff]
        %v420 = vld [vmem:[#allocation5 + $0x50] sm:$0xf]
        %v421 = vld [vmem:[#allocation5 + $0x54] sm:$0xff]
        %v422 = vld [vmem:[#allocation5 + $0x5c] sm:$0xf]
        %v423 = vld [vmem:[#allocation5 + $0x60] sm:$0xff]
        %v424 = vld [vmem:[#allocation5 + $0x68] sm:$0xf]
        %v425 = vld [vmem:[#allocation5 + $0x6c] sm:$0xff]
        %v426 = vld [vmem:[#allocation5 + $0x74] sm:$0xf]
        %v427 = vld [vmem:[#allocation5 + $0x78] sm:$0xff]
        %v428 = vld [vmem:[#allocation5 + $0x80] sm:$0xf]
        %v429 = vld [vmem:[#allocation5 + $0x84] sm:$0xff]
        %v430 = vld [vmem:[#allocation5 + $0x8c] sm:$0xf]
        %v431 = vld [vmem:[#allocation5 + $0x90] sm:$0xff]
        %v432 = vld [vmem:[#allocation5 + $0x98] sm:$0xf]
        %v433 = vld [vmem:[#allocation5 + $0x9c] sm:$0xff]
        %v434 = vld [vmem:[#allocation5 + $0xa4] sm:$0xf]
        %v435 = vld [vmem:[#allocation5 + $0xa8] sm:$0xff]
        %v436 = vld [vmem:[#allocation5 + $0xb0] sm:$0xf]
        %v437 = vld [vmem:[#allocation5 + $0xb4] sm:$0xff]
        %v438 = vld [vmem:[#allocation5 + $0xbc] sm:$0xf]
        %v471 = vunpack.c.l.b16 %v407
        %v472 = vunpack.c.h.b16 %v407
        %v473 = vunpack.c.l.b16 %v408
        %v474 = vunpack.c.l.b16 %v409
        %v475 = vunpack.c.h.b16 %v409
        %v476 = vunpack.c.l.b16 %v410
        %v477 = vunpack.c.l.b16 %v411
        %v478 = vunpack.c.h.b16 %v411
        %v479 = vunpack.c.l.b16 %v412
        %v480 = vunpack.c.l.b16 %v413
        %v481 = vunpack.c.h.b16 %v413
        %v482 = vunpack.c.l.b16 %v414
        %v483 = vunpack.c.l.b16 %v415
        %v484 = vunpack.c.h.b16 %v415
        %v485 = vunpack.c.l.b16 %v416
        %v486 = vunpack.c.l.b16 %v417
        %v487 = vunpack.c.h.b16 %v417
        %v488 = vunpack.c.l.b16 %v418
        %v489 = vunpack.c.l.b16 %v419
        %v490 = vunpack.c.h.b16 %v419
        %v491 = vunpack.c.l.b16 %v420
        %v492 = vunpack.c.l.b16 %v421
        %v493 = vunpack.c.h.b16 %v421
        %v494 = vunpack.c.l.b16 %v422
        %v495 = vunpack.c.l.b16 %v423
        %v496 = vunpack.c.h.b16 %v423
        %v497 = vunpack.c.l.b16 %v424
        %v498 = vunpack.c.l.b16 %v425
        %v499 = vunpack.c.h.b16 %v425
        %v500 = vunpack.c.l.b16 %v426
        %v501 = vunpack.c.l.b16 %v427
        %v502 = vunpack.c.h.b16 %v427
        %v503 = vunpack.c.l.b16 %v428
        %v504 = vunpack.c.l.b16 %v429
        %v505 = vunpack.c.h.b16 %v429
        %v506 = vunpack.c.l.b16 %v430
        %v507 = vunpack.c.l.b16 %v431
        %v508 = vunpack.c.h.b16 %v431
        %v509 = vunpack.c.l.b16 %v432
        %v510 = vunpack.c.l.b16 %v433
        %v511 = vunpack.c.h.b16 %v433
        %v512 = vunpack.c.l.b16 %v434
        %v513 = vunpack.c.l.b16 %v435
        %v514 = vunpack.c.h.b16 %v435
        %v515 = vunpack.c.l.b16 %v436
        %v516 = vunpack.c.l.b16 %v437
        %v517 = vunpack.c.h.b16 %v437
        %v518 = vunpack.c.l.b16 %v438
        %v519 = vpack.c.b16 %v474, %v471
        %v520 = vpack.c.b16 %v475, %v472
        %v521 = vpack.c.b16 %v476, %v473
        %v522 = vpack.c.b16 %v480, %v477
        %v523 = vpack.c.b16 %v481, %v478
        %v524 = vpack.c.b16 %v482, %v479
        %v525 = vpack.c.b16 %v486, %v483
        %v526 = vpack.c.b16 %v487, %v484
        %v527 = vpack.c.b16 %v488, %v485
        %v528 = vpack.c.b16 %v492, %v489
        %v529 = vpack.c.b16 %v493, %v490
        %v530 = vpack.c.b16 %v494, %v491
        %v531 = vpack.c.b16 %v498, %v495
        %v532 = vpack.c.b16 %v499, %v496
        %v533 = vpack.c.b16 %v500, %v497
        %v534 = vpack.c.b16 %v504, %v501
        %v535 = vpack.c.b16 %v505, %v502
        %v536 = vpack.c.b16 %v506, %v503
        %v537 = vpack.c.b16 %v510, %v507
        %v538 = vpack.c.b16 %v511, %v508
        %v539 = vpack.c.b16 %v512, %v509
        %v540 = vpack.c.b16 %v516, %v513
        %v541 = vpack.c.b16 %v517, %v514
        %v542 = vpack.c.b16 %v518, %v515
        %567 = vmatprep.subr.bf16.mxu0 %v541
        %568 = vmatpush1.bf16.msra.mxu0 %v540
        %569 = vmatprep.subr.bf16.mxu0 %v538
        %570 = vmatpush1.bf16.msra.mxu0 %v537
        %571 = vmatprep.subr.bf16.mxu0 %v535
        %572 = vmatpush1.bf16.msra.mxu0 %v534
        %573 = vmatprep.subr.bf16.mxu0 %v532
        %574 = vmatpush1.bf16.msra.mxu0 %v531
        %575 = vmatprep.subr.bf16.mxu0 %v529
        %576 = vmatpush1.bf16.msra.mxu0 %v528
        %577 = vmatprep.subr.bf16.mxu0 %v526
        %578 = vmatpush1.bf16.msra.mxu0 %v525
        %579 = vmatprep.subr.bf16.mxu0 %v523
        %580 = vmatpush1.bf16.msra.mxu0 %v522
        %581 = vmatprep.subr.bf16.mxu0 %v520
        %582 = vmatpush1.bf16.msra.mxu0 %v519
        %583 = vmatprep.subr.bf16.mxu0 0
        %584 = vmatpush2.bf16.msra.mxu0 0
        %585 = vmatprep.subr.bf16.mxu0 0
        %586 = vmatpush2.bf16.msra.mxu0 0
        %587 = vmatprep.subr.bf16.mxu0 0
        %588 = vmatpush2.bf16.msra.mxu0 0
        %589 = vmatprep.subr.bf16.mxu0 0
        %590 = vmatpush2.bf16.msra.mxu0 0
        %591 = vmatprep.subr.bf16.mxu0 0
        %592 = vmatpush2.bf16.msra.mxu0 0
        %593 = vmatprep.subr.bf16.mxu0 0
        %594 = vmatpush2.bf16.msra.mxu0 0
        %595 = vmatprep.subr.bf16.mxu0 0
        %596 = vmatpush2.bf16.msra.mxu0 0
        %597 = vmatprep.subr.bf16.mxu0 0
        %598 = vmatpush2.bf16.msra.mxu0 0
        %599 = vmatprep.mubr.bf16.mxu0 0
        %600 = vmatmul.mubr.bf16.gmra.mxu0 %v403
        %v601 = vpop.f32.mrf.mxu0
        %v602 = vadd.f32 0.0, %v601
        %v603 = vpop.f32.mrf.mxu0
        %v604 = vadd.f32 0.0, %v603
        %v605 = vpop.f32.mrf.mxu0
        %v606 = vadd.f32 0.0, %v605
        %v607 = vpop.f32.mrf.mxu0
        %v608 = vadd.f32 0.0, %v607
        %609 = vmatprep.mubr.bf16.mxu0 0
        %610 = vmatmul.mubr.bf16.gmra.mxu0 %v404
        %v611 = vpop.f32.mrf.mxu0
        %v612 = vadd.f32 0.0, %v611
        %v613 = vpop.f32.mrf.mxu0
        %v614 = vadd.f32 0.0, %v613
        %v615 = vpop.f32.mrf.mxu0
        %v616 = vadd.f32 0.0, %v615
        %v617 = vpop.f32.mrf.mxu0
        %v618 = vadd.f32 0.0, %v617
        %619 = vmatprep.mubr.bf16.mxu0 0
        %620 = vmatmul.mubr.bf16.gmra.mxu0 %v405
        %v621 = vpop.f32.mrf.mxu0
        %v622 = vadd.f32 0.0, %v621
        %v623 = vpop.f32.mrf.mxu0
        %v624 = vadd.f32 0.0, %v623
        %v625 = vpop.f32.mrf.mxu0
        %v626 = vadd.f32 0.0, %v625
        %v627 = vpop.f32.mrf.mxu0
        %v628 = vadd.f32 0.0, %v627
        %629 = vmatprep.mubr.bf16.mxu0 0
        %630 = vmatmul.mubr.bf16.gmra.mxu0 %v406
        %v631 = vpop.f32.mrf.mxu0
        %v632 = vadd.f32 0.0, %v631
        %v633 = vpop.f32.mrf.mxu0
        %v634 = vadd.f32 0.0, %v633
        %v635 = vpop.f32.mrf.mxu0
        %v636 = vadd.f32 0.0, %v635
        %v637 = vpop.f32.mrf.mxu0
        %v638 = vadd.f32 0.0, %v637
        %639 = vdwg.mxu0
        %640 = vmatprep.subr.bf16.mxu0 0
        %641 = vmatpush1.bf16.msra.mxu0 %v542
        %642 = vmatprep.subr.bf16.mxu0 0
        %643 = vmatpush1.bf16.msra.mxu0 %v539
        %644 = vmatprep.subr.bf16.mxu0 0
        %645 = vmatpush1.bf16.msra.mxu0 %v536
        %646 = vmatprep.subr.bf16.mxu0 0
        %647 = vmatpush1.bf16.msra.mxu0 %v533
        %648 = vmatprep.subr.bf16.mxu0 0
        %649 = vmatpush1.bf16.msra.mxu0 %v530
        %650 = vmatprep.subr.bf16.mxu0 0
        %651 = vmatpush1.bf16.msra.mxu0 %v527
        %652 = vmatprep.subr.bf16.mxu0 0
        %653 = vmatpush1.bf16.msra.mxu0 %v524
        %654 = vmatprep.subr.bf16.mxu0 0
        %655 = vmatpush1.bf16.msra.mxu0 %v521
        %656 = vmatprep.subr.bf16.mxu0 0
        %657 = vmatpush2.bf16.msra.mxu0 0
        %658 = vmatprep.subr.bf16.mxu0 0
        %659 = vmatpush2.bf16.msra.mxu0 0
        %660 = vmatprep.subr.bf16.mxu0 0
        %661 = vmatpush2.bf16.msra.mxu0 0
        %662 = vmatprep.subr.bf16.mxu0 0
        %663 = vmatpush2.bf16.msra.mxu0 0
        %664 = vmatprep.subr.bf16.mxu0 0
        %665 = vmatpush2.bf16.msra.mxu0 0
        %666 = vmatprep.subr.bf16.mxu0 0
        %667 = vmatpush2.bf16.msra.mxu0 0
        %668 = vmatprep.subr.bf16.mxu0 0
        %669 = vmatpush2.bf16.msra.mxu0 0
        %670 = vmatprep.subr.bf16.mxu0 0
        %671 = vmatpush2.bf16.msra.mxu0 0
        %672 = vmatprep.mubr.bf16.mxu0 0
        %673 = vmatmul.mubr.bf16.gmra.mxu0 %v403
        %v674 = vpop.f32.mrf.mxu0
        %v675 = vadd.f32 0.0, %v674
        %v676 = vpop.f32.mrf.mxu0
        %v677 = vpop.f32.mrf.mxu0
        %v678 = vadd.f32 0.0, %v677
        %v679 = vpop.f32.mrf.mxu0
        %680 = vmatprep.mubr.bf16.mxu0 0
        %681 = vmatmul.mubr.bf16.gmra.mxu0 %v404
        %v682 = vpop.f32.mrf.mxu0
        %v683 = vadd.f32 0.0, %v682
        %v684 = vpop.f32.mrf.mxu0
        %v685 = vpop.f32.mrf.mxu0
        %v686 = vadd.f32 0.0, %v685
        %v687 = vpop.f32.mrf.mxu0
        %688 = vmatprep.mubr.bf16.mxu0 0
        %689 = vmatmul.mubr.bf16.gmra.mxu0 %v405
        %v690 = vpop.f32.mrf.mxu0
        %v691 = vadd.f32 0.0, %v690
        %v692 = vpop.f32.mrf.mxu0
        %v693 = vpop.f32.mrf.mxu0
        %v694 = vadd.f32 0.0, %v693
        %v695 = vpop.f32.mrf.mxu0
        %696 = vmatprep.mubr.bf16.mxu0 0
        %697 = vmatmul.mubr.bf16.gmra.mxu0 %v406
        %v698 = vpop.f32.mrf.mxu0
        %v699 = vadd.f32 0.0, %v698
        %v700 = vpop.f32.mrf.mxu0
        %v701 = vpop.f32.mrf.mxu0
        %v702 = vadd.f32 0.0, %v701
        %v703 = vpop.f32.mrf.mxu0
        %704 = vdwg.mxu0
        %v705 = vpack.c.bf16 %v606, %v602
        %v706 = vpack.c.bf16 %v608, %v604
        %v707 = vpack.c.bf16 %v678, %v675
        %v708 = vpack.c.bf16 %v616, %v612
        %v709 = vpack.c.bf16 %v618, %v614
        %v710 = vpack.c.bf16 %v686, %v683
        %v711 = vpack.c.bf16 %v626, %v622
        %v712 = vpack.c.bf16 %v628, %v624
        %v713 = vpack.c.bf16 %v694, %v691
        %v714 = vpack.c.bf16 %v636, %v632
        %v715 = vpack.c.bf16 %v638, %v634
        %v716 = vpack.c.bf16 %v702, %v699
        %vm717 = vcmask 261120
        %v719 = vsel %vm717, %v705, 0
        %v722 = vsel %vm717, %v706, 0
        %724 = vmatprep.subr.bf16.mxu0 0
        %725 = vmatpush1.bf16.xpose.msra.mxu0 0
        %726 = vmatprep.subr.bf16.mxu0 0
        %727 = vmatpush1.bf16.xpose.msra.mxu0 0
        %728 = vmatprep.subr.bf16.mxu0 0
        %729 = vmatpush1.bf16.xpose.msra.mxu0 0
        %730 = vmatprep.subr.bf16.mxu0 0
        %731 = vmatpush1.bf16.xpose.msra.mxu0 0
        %732 = vmatprep.subr.bf16.mxu0 0
        %733 = vmatpush1.bf16.xpose.msra.mxu0 0
        %734 = vmatprep.subr.bf16.mxu0 0
        %735 = vmatpush1.bf16.xpose.msra.mxu0 0
        %736 = vmatprep.subr.bf16.mxu0 0
        %737 = vmatpush1.bf16.xpose.msra.mxu0 0
        %738 = vmatprep.subr.bf16.mxu0 0
        %739 = vmatpush1.bf16.xpose.msra.mxu0 %v722
        %740 = vmatprep.subr.bf16.mxu0 0
        %741 = vmatpush2.bf16.xpose.msra.mxu0 0
        %742 = vmatprep.subr.bf16.mxu0 0
        %743 = vmatpush2.bf16.xpose.msra.mxu0 0
        %744 = vmatprep.subr.bf16.mxu0 0
        %745 = vmatpush2.bf16.xpose.msra.mxu0 0
        %746 = vmatprep.subr.bf16.mxu0 0
        %747 = vmatpush2.bf16.xpose.msra.mxu0 0
        %748 = vmatprep.subr.bf16.mxu0 0
        %749 = vmatpush2.bf16.xpose.msra.mxu0 0
        %750 = vmatprep.subr.bf16.mxu0 0
        %751 = vmatpush2.bf16.xpose.msra.mxu0 0
        %752 = vmatprep.subr.bf16.mxu0 0
        %753 = vmatpush2.bf16.xpose.msra.mxu0 0
        %754 = vmatprep.subr.bf16.mxu0 0
        %755 = vmatpush2.bf16.xpose.msra.mxu0 0
        %756 = vmatprep.mubr.bf16.mxu0 0
        %757 = vmatmul.mubr.bf16.gmra.mxu0 %v719
        %v758 = vpop.f32.mrf.mxu0
        %v759 = vadd.f32 0.0, %v758
        %v760 = vpop.f32.mrf.mxu0
        %v761 = vpop.f32.mrf.mxu0
        %v762 = vadd.f32 0.0, %v761
        %v763 = vpop.f32.mrf.mxu0
        %764 = vdwg.mxu0
        %v766 = vsel %vm717, %v708, 0
        %v769 = vsel %vm717, %v709, 0
        %771 = vmatprep.subr.bf16.mxu0 0
        %772 = vmatpush1.bf16.xpose.msra.mxu0 0
        %773 = vmatprep.subr.bf16.mxu0 0
        %774 = vmatpush1.bf16.xpose.msra.mxu0 0
        %775 = vmatprep.subr.bf16.mxu0 0
        %776 = vmatpush1.bf16.xpose.msra.mxu0 0
        %777 = vmatprep.subr.bf16.mxu0 0
        %778 = vmatpush1.bf16.xpose.msra.mxu0 0
        %779 = vmatprep.subr.bf16.mxu0 0
        %780 = vmatpush1.bf16.xpose.msra.mxu0 0
        %781 = vmatprep.subr.bf16.mxu0 0
        %782 = vmatpush1.bf16.xpose.msra.mxu0 0
        %783 = vmatprep.subr.bf16.mxu0 0
        %784 = vmatpush1.bf16.xpose.msra.mxu0 0
        %785 = vmatprep.subr.bf16.mxu0 0
        %786 = vmatpush1.bf16.xpose.msra.mxu0 %v769
        %787 = vmatprep.subr.bf16.mxu0 0
        %788 = vmatpush2.bf16.xpose.msra.mxu0 0
        %789 = vmatprep.subr.bf16.mxu0 0
        %790 = vmatpush2.bf16.xpose.msra.mxu0 0
        %791 = vmatprep.subr.bf16.mxu0 0
        %792 = vmatpush2.bf16.xpose.msra.mxu0 0
        %793 = vmatprep.subr.bf16.mxu0 0
        %794 = vmatpush2.bf16.xpose.msra.mxu0 0
        %795 = vmatprep.subr.bf16.mxu0 0
        %796 = vmatpush2.bf16.xpose.msra.mxu0 0
        %797 = vmatprep.subr.bf16.mxu0 0
        %798 = vmatpush2.bf16.xpose.msra.mxu0 0
        %799 = vmatprep.subr.bf16.mxu0 0
        %800 = vmatpush2.bf16.xpose.msra.mxu0 0
        %801 = vmatprep.subr.bf16.mxu0 0
        %802 = vmatpush2.bf16.xpose.msra.mxu0 0
        %803 = vmatprep.mubr.bf16.mxu0 0
        %804 = vmatmul.mubr.bf16.gmra.mxu0 %v766
        %v805 = vpop.f32.mrf.mxu0
        %v806 = vadd.f32 0.0, %v805
        %v807 = vpop.f32.mrf.mxu0
        %v808 = vpop.f32.mrf.mxu0
        %v809 = vadd.f32 0.0, %v808
        %v810 = vpop.f32.mrf.mxu0
        %811 = vdwg.mxu0
        %v813 = vsel %vm717, %v711, 0
        %v816 = vsel %vm717, %v712, 0
        %818 = vmatprep.subr.bf16.mxu0 0
        %819 = vmatpush1.bf16.xpose.msra.mxu0 0
        %820 = vmatprep.subr.bf16.mxu0 0
        %821 = vmatpush1.bf16.xpose.msra.mxu0 0
        %822 = vmatprep.subr.bf16.mxu0 0
        %823 = vmatpush1.bf16.xpose.msra.mxu0 0
        %824 = vmatprep.subr.bf16.mxu0 0
        %825 = vmatpush1.bf16.xpose.msra.mxu0 0
        %826 = vmatprep.subr.bf16.mxu0 0
        %827 = vmatpush1.bf16.xpose.msra.mxu0 0
        %828 = vmatprep.subr.bf16.mxu0 0
        %829 = vmatpush1.bf16.xpose.msra.mxu0 0
        %830 = vmatprep.subr.bf16.mxu0 0
        %831 = vmatpush1.bf16.xpose.msra.mxu0 0
        %832 = vmatprep.subr.bf16.mxu0 0
        %833 = vmatpush1.bf16.xpose.msra.mxu0 %v816
        %834 = vmatprep.subr.bf16.mxu0 0
        %835 = vmatpush2.bf16.xpose.msra.mxu0 0
        %836 = vmatprep.subr.bf16.mxu0 0
        %837 = vmatpush2.bf16.xpose.msra.mxu0 0
        %838 = vmatprep.subr.bf16.mxu0 0
        %839 = vmatpush2.bf16.xpose.msra.mxu0 0
        %840 = vmatprep.subr.bf16.mxu0 0
        %841 = vmatpush2.bf16.xpose.msra.mxu0 0
        %842 = vmatprep.subr.bf16.mxu0 0
        %843 = vmatpush2.bf16.xpose.msra.mxu0 0
        %844 = vmatprep.subr.bf16.mxu0 0
        %845 = vmatpush2.bf16.xpose.msra.mxu0 0
        %846 = vmatprep.subr.bf16.mxu0 0
        %847 = vmatpush2.bf16.xpose.msra.mxu0 0
        %848 = vmatprep.subr.bf16.mxu0 0
        %849 = vmatpush2.bf16.xpose.msra.mxu0 0
        %850 = vmatprep.mubr.bf16.mxu0 0
        %851 = vmatmul.mubr.bf16.gmra.mxu0 %v813
        %v852 = vpop.f32.mrf.mxu0
        %v853 = vadd.f32 0.0, %v852
        %v854 = vpop.f32.mrf.mxu0
        %v855 = vpop.f32.mrf.mxu0
        %v856 = vadd.f32 0.0, %v855
        %v857 = vpop.f32.mrf.mxu0
        %858 = vdwg.mxu0
        %v860 = vsel %vm717, %v714, 0
        %v863 = vsel %vm717, %v715, 0
        %865 = vmatprep.subr.bf16.mxu0 0
        %866 = vmatpush1.bf16.xpose.msra.mxu0 0
        %867 = vmatprep.subr.bf16.mxu0 0
        %868 = vmatpush1.bf16.xpose.msra.mxu0 0
        %869 = vmatprep.subr.bf16.mxu0 0
        %870 = vmatpush1.bf16.xpose.msra.mxu0 0
        %871 = vmatprep.subr.bf16.mxu0 0
        %872 = vmatpush1.bf16.xpose.msra.mxu0 0
        %873 = vmatprep.subr.bf16.mxu0 0
        %874 = vmatpush1.bf16.xpose.msra.mxu0 0
        %875 = vmatprep.subr.bf16.mxu0 0
        %876 = vmatpush1.bf16.xpose.msra.mxu0 0
        %877 = vmatprep.subr.bf16.mxu0 0
        %878 = vmatpush1.bf16.xpose.msra.mxu0 0
        %879 = vmatprep.subr.bf16.mxu0 0
        %880 = vmatpush1.bf16.xpose.msra.mxu0 %v863
        %881 = vmatprep.subr.bf16.mxu0 0
        %882 = vmatpush2.bf16.xpose.msra.mxu0 0
        %883 = vmatprep.subr.bf16.mxu0 0
        %884 = vmatpush2.bf16.xpose.msra.mxu0 0
        %885 = vmatprep.subr.bf16.mxu0 0
        %886 = vmatpush2.bf16.xpose.msra.mxu0 0
        %887 = vmatprep.subr.bf16.mxu0 0
        %888 = vmatpush2.bf16.xpose.msra.mxu0 0
        %889 = vmatprep.subr.bf16.mxu0 0
        %890 = vmatpush2.bf16.xpose.msra.mxu0 0
        %891 = vmatprep.subr.bf16.mxu0 0
        %892 = vmatpush2.bf16.xpose.msra.mxu0 0
        %893 = vmatprep.subr.bf16.mxu0 0
        %894 = vmatpush2.bf16.xpose.msra.mxu0 0
        %895 = vmatprep.subr.bf16.mxu0 0
        %896 = vmatpush2.bf16.xpose.msra.mxu0 0
        %897 = vmatprep.mubr.bf16.mxu0 0
        %898 = vmatmul.mubr.bf16.gmra.mxu0 %v860
        %v899 = vpop.f32.mrf.mxu0
        %v900 = vadd.f32 0.0, %v899
        %v901 = vpop.f32.mrf.mxu0
        %v902 = vpop.f32.mrf.mxu0
        %v903 = vadd.f32 0.0, %v902
        %v904 = vpop.f32.mrf.mxu0
        %905 = vdwg.mxu0
        %vm906 = vcmask 130048
        %v907 = vsel %vm906, %v759, -inf
        %908 = vmax.xlane.f32.xlu0 %v907
        %v909 = vpop.xlane.xlu0 %908
        %v910 = vsel %vm906, %v762, -inf
        %911 = vmax.xlane.f32.xlu0 %v910
        %v912 = vpop.xlane.xlu0 %911
        %v913 = vsel %vm906, %v806, -inf
        %914 = vmax.xlane.f32.xlu0 %v913
        %v915 = vpop.xlane.xlu0 %914
        %v916 = vsel %vm906, %v809, -inf
        %917 = vmax.xlane.f32.xlu0 %v916
        %v918 = vpop.xlane.xlu0 %917
        %v919 = vsel %vm906, %v853, -inf
        %920 = vmax.xlane.f32.xlu0 %v919
        %v921 = vpop.xlane.xlu0 %920
        %v922 = vsel %vm906, %v856, -inf
        %923 = vmax.xlane.f32.xlu0 %v922
        %v924 = vpop.xlane.xlu0 %923
        %v925 = vsel %vm906, %v900, -inf
        %926 = vmax.xlane.f32.xlu0 %v925
        %v927 = vpop.xlane.xlu0 %926
        %v928 = vsel %vm906, %v903, -inf
        %929 = vmax.xlane.f32.xlu0 %v928
        %v930 = vpop.xlane.xlu0 %929
        %v931 = vsub.f32 %v759, %v909
        %v932 = vsub.f32 %v762, %v912
        %v933 = vsub.f32 %v806, %v915
        %v934 = vsub.f32 %v809, %v918
        %v935 = vsub.f32 %v853, %v921
        %v936 = vsub.f32 %v856, %v924
        %v937 = vsub.f32 %v900, %v927
        %v938 = vsub.f32 %v903, %v930
        %v939 = vmul.f32 %v931, 1.442695
        %v940 = vpow.pop %v939
        %v941 = vmul.f32 %v932, 1.442695
        %v942 = vpow.pop %v941
        %v943 = vmul.f32 %v933, 1.442695
        %v944 = vpow.pop %v943
        %v945 = vmul.f32 %v934, 1.442695
        %v946 = vpow.pop %v945
        %v947 = vmul.f32 %v935, 1.442695
        %v948 = vpow.pop %v947
        %v949 = vmul.f32 %v936, 1.442695
        %v950 = vpow.pop %v949
        %v951 = vmul.f32 %v937, 1.442695
        %v952 = vpow.pop %v951
        %v953 = vmul.f32 %v938, 1.442695
        %v954 = vpow.pop %v953
        %v955 = vsel %vm906, %v940, 0.0
        %956 = vadd.xlane.f32.xlu0 %v955
        %v957 = vpop.xlane.xlu0 %956
        %v958 = vsel %vm906, %v942, 0.0
        %959 = vadd.xlane.f32.xlu0 %v958
        %v960 = vpop.xlane.xlu0 %959
        %v961 = vsel %vm906, %v944, 0.0
        %962 = vadd.xlane.f32.xlu0 %v961
        %v963 = vpop.xlane.xlu0 %962
        %v964 = vsel %vm906, %v946, 0.0
        %965 = vadd.xlane.f32.xlu0 %v964
        %v966 = vpop.xlane.xlu0 %965
        %v967 = vsel %vm906, %v948, 0.0
        %968 = vadd.xlane.f32.xlu0 %v967
        %v969 = vpop.xlane.xlu0 %968
        %v970 = vsel %vm906, %v950, 0.0
        %971 = vadd.xlane.f32.xlu0 %v970
        %v972 = vpop.xlane.xlu0 %971
        %v973 = vsel %vm906, %v952, 0.0
        %974 = vadd.xlane.f32.xlu0 %v973
        %v975 = vpop.xlane.xlu0 %974
        %v976 = vsel %vm906, %v954, 0.0
        %977 = vadd.xlane.f32.xlu0 %v976
        %v978 = vpop.xlane.xlu0 %977
        %v979 = vrcp.pop %v957
        %v980 = vmul.f32 %v940, %v979
        %v981 = vrcp.pop %v960
        %v982 = vmul.f32 %v942, %v981
        %v983 = vrcp.pop %v963
        %v984 = vmul.f32 %v944, %v983
        %v985 = vrcp.pop %v966
        %v986 = vmul.f32 %v946, %v985
        %v987 = vrcp.pop %v969
        %v988 = vmul.f32 %v948, %v987
        %v989 = vrcp.pop %v972
        %v990 = vmul.f32 %v950, %v989
        %v991 = vrcp.pop %v975
        %v992 = vmul.f32 %v952, %v991
        %v993 = vrcp.pop %v978
        %v994 = vmul.f32 %v954, %v993
        %v995 = vpack.c.bf16 %v982, %v980
        %v996 = vpack.c.bf16 %v986, %v984
        %v997 = vpack.c.bf16 %v990, %v988
        %v998 = vpack.c.bf16 %v994, %v992
        %v1000 = vsel %vm906, %v995, 0
        %1002 = vmatprep.subr.bf16.mxu0 0
        %1003 = vmatpush1.bf16.msra.mxu0 0
        %1004 = vmatprep.subr.bf16.mxu0 0
        %1005 = vmatpush1.bf16.msra.mxu0 0
        %1006 = vmatprep.subr.bf16.mxu0 0
        %1007 = vmatpush1.bf16.msra.mxu0 0
        %1008 = vmatprep.subr.bf16.mxu0 0
        %1009 = vmatpush1.bf16.msra.mxu0 0
        %1010 = vmatprep.subr.bf16.mxu0 0
        %1011 = vmatpush1.bf16.msra.mxu0 0
        %1012 = vmatprep.subr.bf16.mxu0 0
        %1013 = vmatpush1.bf16.msra.mxu0 0
        %1014 = vmatprep.subr.bf16.mxu0 0
        %1015 = vmatpush1.bf16.msra.mxu0 0
        %1016 = vmatprep.subr.bf16.mxu0 0
        %1017 = vmatpush1.bf16.msra.mxu0 %v707
        %1018 = vmatprep.subr.bf16.mxu0 0
        %1019 = vmatpush2.bf16.msra.mxu0 0
        %1020 = vmatprep.subr.bf16.mxu0 0
        %1021 = vmatpush2.bf16.msra.mxu0 0
        %1022 = vmatprep.subr.bf16.mxu0 0
        %1023 = vmatpush2.bf16.msra.mxu0 0
        %1024 = vmatprep.subr.bf16.mxu0 0
        %1025 = vmatpush2.bf16.msra.mxu0 0
        %1026 = vmatprep.subr.bf16.mxu0 0
        %1027 = vmatpush2.bf16.msra.mxu0 0
        %1028 = vmatprep.subr.bf16.mxu0 0
        %1029 = vmatpush2.bf16.msra.mxu0 0
        %1030 = vmatprep.subr.bf16.mxu0 0
        %1031 = vmatpush2.bf16.msra.mxu0 0
        %1032 = vmatprep.subr.bf16.mxu0 0
        %1033 = vmatpush2.bf16.msra.mxu0 0
        %1034 = vmatprep.mubr.bf16.mxu0 0
        %1035 = vmatmul.mubr.bf16.gmra.mxu0 %v1000
        %v1036 = vpop.f32.mrf.mxu0
        %v1037 = vadd.f32 0.0, %v1036
        %v1038 = vpop.f32.mrf.mxu0
        %v1039 = vpop.f32.mrf.mxu0
        %v1040 = vadd.f32 0.0, %v1039
        %v1041 = vpop.f32.mrf.mxu0
        %1042 = vdwg.mxu0
        %v1044 = vsel %vm906, %v996, 0
        %1046 = vmatprep.subr.bf16.mxu0 0
        %1047 = vmatpush1.bf16.msra.mxu0 0
        %1048 = vmatprep.subr.bf16.mxu0 0
        %1049 = vmatpush1.bf16.msra.mxu0 0
        %1050 = vmatprep.subr.bf16.mxu0 0
        %1051 = vmatpush1.bf16.msra.mxu0 0
        %1052 = vmatprep.subr.bf16.mxu0 0
        %1053 = vmatpush1.bf16.msra.mxu0 0
        %1054 = vmatprep.subr.bf16.mxu0 0
        %1055 = vmatpush1.bf16.msra.mxu0 0
        %1056 = vmatprep.subr.bf16.mxu0 0
        %1057 = vmatpush1.bf16.msra.mxu0 0
        %1058 = vmatprep.subr.bf16.mxu0 0
        %1059 = vmatpush1.bf16.msra.mxu0 0
        %1060 = vmatprep.subr.bf16.mxu0 0
        %1061 = vmatpush1.bf16.msra.mxu0 %v710
        %1062 = vmatprep.subr.bf16.mxu0 0
        %1063 = vmatpush2.bf16.msra.mxu0 0
        %1064 = vmatprep.subr.bf16.mxu0 0
        %1065 = vmatpush2.bf16.msra.mxu0 0
        %1066 = vmatprep.subr.bf16.mxu0 0
        %1067 = vmatpush2.bf16.msra.mxu0 0
        %1068 = vmatprep.subr.bf16.mxu0 0
        %1069 = vmatpush2.bf16.msra.mxu0 0
        %1070 = vmatprep.subr.bf16.mxu0 0
        %1071 = vmatpush2.bf16.msra.mxu0 0
        %1072 = vmatprep.subr.bf16.mxu0 0
        %1073 = vmatpush2.bf16.msra.mxu0 0
        %1074 = vmatprep.subr.bf16.mxu0 0
        %1075 = vmatpush2.bf16.msra.mxu0 0
        %1076 = vmatprep.subr.bf16.mxu0 0
        %1077 = vmatpush2.bf16.msra.mxu0 0
        %1078 = vmatprep.mubr.bf16.mxu0 0
        %1079 = vmatmul.mubr.bf16.gmra.mxu0 %v1044
        %v1080 = vpop.f32.mrf.mxu0
        %v1081 = vadd.f32 0.0, %v1080
        %v1082 = vpop.f32.mrf.mxu0
        %v1083 = vpop.f32.mrf.mxu0
        %v1084 = vadd.f32 0.0, %v1083
        %v1085 = vpop.f32.mrf.mxu0
        %1086 = vdwg.mxu0
        %v1088 = vsel %vm906, %v997, 0
        %1090 = vmatprep.subr.bf16.mxu0 0
        %1091 = vmatpush1.bf16.msra.mxu0 0
        %1092 = vmatprep.subr.bf16.mxu0 0
        %1093 = vmatpush1.bf16.msra.mxu0 0
        %1094 = vmatprep.subr.bf16.mxu0 0
        %1095 = vmatpush1.bf16.msra.mxu0 0
        %1096 = vmatprep.subr.bf16.mxu0 0
        %1097 = vmatpush1.bf16.msra.mxu0 0
        %1098 = vmatprep.subr.bf16.mxu0 0
        %1099 = vmatpush1.bf16.msra.mxu0 0
        %1100 = vmatprep.subr.bf16.mxu0 0
        %1101 = vmatpush1.bf16.msra.mxu0 0
        %1102 = vmatprep.subr.bf16.mxu0 0
        %1103 = vmatpush1.bf16.msra.mxu0 0
        %1104 = vmatprep.subr.bf16.mxu0 0
        %1105 = vmatpush1.bf16.msra.mxu0 %v713
        %1106 = vmatprep.subr.bf16.mxu0 0
        %1107 = vmatpush2.bf16.msra.mxu0 0
        %1108 = vmatprep.subr.bf16.mxu0 0
        %1109 = vmatpush2.bf16.msra.mxu0 0
        %1110 = vmatprep.subr.bf16.mxu0 0
        %1111 = vmatpush2.bf16.msra.mxu0 0
        %1112 = vmatprep.subr.bf16.mxu0 0
        %1113 = vmatpush2.bf16.msra.mxu0 0
        %1114 = vmatprep.subr.bf16.mxu0 0
        %1115 = vmatpush2.bf16.msra.mxu0 0
        %1116 = vmatprep.subr.bf16.mxu0 0
        %1117 = vmatpush2.bf16.msra.mxu0 0
        %1118 = vmatprep.subr.bf16.mxu0 0
        %1119 = vmatpush2.bf16.msra.mxu0 0
        %1120 = vmatprep.subr.bf16.mxu0 0
        %1121 = vmatpush2.bf16.msra.mxu0 0
        %1122 = vmatprep.mubr.bf16.mxu0 0
        %1123 = vmatmul.mubr.bf16.gmra.mxu0 %v1088
        %v1124 = vpop.f32.mrf.mxu0
        %v1125 = vadd.f32 0.0, %v1124
        %v1126 = vpop.f32.mrf.mxu0
        %v1127 = vpop.f32.mrf.mxu0
        %v1128 = vadd.f32 0.0, %v1127
        %v1129 = vpop.f32.mrf.mxu0
        %1130 = vdwg.mxu0
        %v1132 = vsel %vm906, %v998, 0
        %1134 = vmatprep.subr.bf16.mxu0 0
        %1135 = vmatpush1.bf16.msra.mxu0 0
        %1136 = vmatprep.subr.bf16.mxu0 0
        %1137 = vmatpush1.bf16.msra.mxu0 0
        %1138 = vmatprep.subr.bf16.mxu0 0
        %1139 = vmatpush1.bf16.msra.mxu0 0
        %1140 = vmatprep.subr.bf16.mxu0 0
        %1141 = vmatpush1.bf16.msra.mxu0 0
        %1142 = vmatprep.subr.bf16.mxu0 0
        %1143 = vmatpush1.bf16.msra.mxu0 0
        %1144 = vmatprep.subr.bf16.mxu0 0
        %1145 = vmatpush1.bf16.msra.mxu0 0
        %1146 = vmatprep.subr.bf16.mxu0 0
        %1147 = vmatpush1.bf16.msra.mxu0 0
        %1148 = vmatprep.subr.bf16.mxu0 0
        %1149 = vmatpush1.bf16.msra.mxu0 %v716
        %1150 = vmatprep.subr.bf16.mxu0 0
        %1151 = vmatpush2.bf16.msra.mxu0 0
        %1152 = vmatprep.subr.bf16.mxu0 0
        %1153 = vmatpush2.bf16.msra.mxu0 0
        %1154 = vmatprep.subr.bf16.mxu0 0
        %1155 = vmatpush2.bf16.msra.mxu0 0
        %1156 = vmatprep.subr.bf16.mxu0 0
        %1157 = vmatpush2.bf16.msra.mxu0 0
        %1158 = vmatprep.subr.bf16.mxu0 0
        %1159 = vmatpush2.bf16.msra.mxu0 0
        %1160 = vmatprep.subr.bf16.mxu0 0
        %1161 = vmatpush2.bf16.msra.mxu0 0
        %1162 = vmatprep.subr.bf16.mxu0 0
        %1163 = vmatpush2.bf16.msra.mxu0 0
        %1164 = vmatprep.subr.bf16.mxu0 0
        %1165 = vmatpush2.bf16.msra.mxu0 0
        %1166 = vmatprep.mubr.bf16.mxu0 0
        %1167 = vmatmul.mubr.bf16.gmra.mxu0 %v1132
        %v1168 = vpop.f32.mrf.mxu0
        %v1169 = vadd.f32 0.0, %v1168
        %v1170 = vpop.f32.mrf.mxu0
        %v1171 = vpop.f32.mrf.mxu0
        %v1172 = vadd.f32 0.0, %v1171
        %v1173 = vpop.f32.mrf.mxu0
        %1174 = vdwg.mxu0
        %v1175 = vpack.c.bf16 %v1040, %v1037
        %v1176 = vpack.c.bf16 %v1084, %v1081
        %v1177 = vpack.c.bf16 %v1128, %v1125
        %v1178 = vpack.c.bf16 %v1172, %v1169
        %1180 = vrot.lane.b32.xlu0 %v705, 96
        %v1181 = vpop.permute.xlu0 %1180
        %1183 = vrot.lane.b32.xlu0 %v706, 96
        %v1184 = vpop.permute.xlu0 %1183
        %v1186 = vsel %vm717, %v1181, 0
        %v1189 = vsel %vm717, %v1184, 0
        %1191 = vmatprep.subr.bf16.mxu0 0
        %1192 = vmatpush1.bf16.xpose.msra.mxu0 0
        %1193 = vmatprep.subr.bf16.mxu0 0
        %1194 = vmatpush1.bf16.xpose.msra.mxu0 0
        %1195 = vmatprep.subr.bf16.mxu0 0
        %1196 = vmatpush1.bf16.xpose.msra.mxu0 0
        %1197 = vmatprep.subr.bf16.mxu0 0
        %1198 = vmatpush1.bf16.xpose.msra.mxu0 0
        %1199 = vmatprep.subr.bf16.mxu0 0
        %1200 = vmatpush1.bf16.xpose.msra.mxu0 0
        %1201 = vmatprep.subr.bf16.mxu0 0
        %1202 = vmatpush1.bf16.xpose.msra.mxu0 0
        %1203 = vmatprep.subr.bf16.mxu0 0
        %1204 = vmatpush1.bf16.xpose.msra.mxu0 0
        %1205 = vmatprep.subr.bf16.mxu0 0
        %1206 = vmatpush1.bf16.xpose.msra.mxu0 %v1189
        %1207 = vmatprep.subr.bf16.mxu0 0
        %1208 = vmatpush2.bf16.xpose.msra.mxu0 0
        %1209 = vmatprep.subr.bf16.mxu0 0
        %1210 = vmatpush2.bf16.xpose.msra.mxu0 0
        %1211 = vmatprep.subr.bf16.mxu0 0
        %1212 = vmatpush2.bf16.xpose.msra.mxu0 0
        %1213 = vmatprep.subr.bf16.mxu0 0
        %1214 = vmatpush2.bf16.xpose.msra.mxu0 0
        %1215 = vmatprep.subr.bf16.mxu0 0
        %1216 = vmatpush2.bf16.xpose.msra.mxu0 0
        %1217 = vmatprep.subr.bf16.mxu0 0
        %1218 = vmatpush2.bf16.xpose.msra.mxu0 0
        %1219 = vmatprep.subr.bf16.mxu0 0
        %1220 = vmatpush2.bf16.xpose.msra.mxu0 0
        %1221 = vmatprep.subr.bf16.mxu0 0
        %1222 = vmatpush2.bf16.xpose.msra.mxu0 0
        %1223 = vmatprep.mubr.bf16.mxu0 0
        %1224 = vmatmul.mubr.bf16.gmra.mxu0 %v1186
        %v1225 = vpop.f32.mrf.mxu0
        %v1226 = vadd.f32 0.0, %v1225
        %v1227 = vpop.f32.mrf.mxu0
        %v1228 = vpop.f32.mrf.mxu0
        %v1229 = vadd.f32 0.0, %v1228
        %v1230 = vpop.f32.mrf.mxu0
        %1231 = vdwg.mxu0
        %1233 = vrot.lane.b32.xlu0 %v708, 96
        %v1234 = vpop.permute.xlu0 %1233
        %1236 = vrot.lane.b32.xlu0 %v709, 96
        %v1237 = vpop.permute.xlu0 %1236
        %v1239 = vsel %vm717, %v1234, 0
        %v1242 = vsel %vm717, %v1237, 0
        %1244 = vmatprep.subr.bf16.mxu0 0
        %1245 = vmatpush1.bf16.xpose.msra.mxu0 0
        %1246 = vmatprep.subr.bf16.mxu0 0
        %1247 = vmatpush1.bf16.xpose.msra.mxu0 0
        %1248 = vmatprep.subr.bf16.mxu0 0
        %1249 = vmatpush1.bf16.xpose.msra.mxu0 0
        %1250 = vmatprep.subr.bf16.mxu0 0
        %1251 = vmatpush1.bf16.xpose.msra.mxu0 0
        %1252 = vmatprep.subr.bf16.mxu0 0
        %1253 = vmatpush1.bf16.xpose.msra.mxu0 0
        %1254 = vmatprep.subr.bf16.mxu0 0
        %1255 = vmatpush1.bf16.xpose.msra.mxu0 0
        %1256 = vmatprep.subr.bf16.mxu0 0
        %1257 = vmatpush1.bf16.xpose.msra.mxu0 0
        %1258 = vmatprep.subr.bf16.mxu0 0
        %1259 = vmatpush1.bf16.xpose.msra.mxu0 %v1242
        %1260 = vmatprep.subr.bf16.mxu0 0
        %1261 = vmatpush2.bf16.xpose.msra.mxu0 0
        %1262 = vmatprep.subr.bf16.mxu0 0
        %1263 = vmatpush2.bf16.xpose.msra.mxu0 0
        %1264 = vmatprep.subr.bf16.mxu0 0
        %1265 = vmatpush2.bf16.xpose.msra.mxu0 0
        %1266 = vmatprep.subr.bf16.mxu0 0
        %1267 = vmatpush2.bf16.xpose.msra.mxu0 0
        %1268 = vmatprep.subr.bf16.mxu0 0
        %1269 = vmatpush2.bf16.xpose.msra.mxu0 0
        %1270 = vmatprep.subr.bf16.mxu0 0
        %1271 = vmatpush2.bf16.xpose.msra.mxu0 0
        %1272 = vmatprep.subr.bf16.mxu0 0
        %1273 = vmatpush2.bf16.xpose.msra.mxu0 0
        %1274 = vmatprep.subr.bf16.mxu0 0
        %1275 = vmatpush2.bf16.xpose.msra.mxu0 0
        %1276 = vmatprep.mubr.bf16.mxu0 0
        %1277 = vmatmul.mubr.bf16.gmra.mxu0 %v1239
        %v1278 = vpop.f32.mrf.mxu0
        %v1279 = vadd.f32 0.0, %v1278
        %v1280 = vpop.f32.mrf.mxu0
        %v1281 = vpop.f32.mrf.mxu0
        %v1282 = vadd.f32 0.0, %v1281
        %v1283 = vpop.f32.mrf.mxu0
        %1284 = vdwg.mxu0
        %1286 = vrot.lane.b32.xlu0 %v711, 96
        %v1287 = vpop.permute.xlu0 %1286
        %1289 = vrot.lane.b32.xlu0 %v712, 96
        %v1290 = vpop.permute.xlu0 %1289
        %v1292 = vsel %vm717, %v1287, 0
        %v1295 = vsel %vm717, %v1290, 0
        %1297 = vmatprep.subr.bf16.mxu0 0
        %1298 = vmatpush1.bf16.xpose.msra.mxu0 0
        %1299 = vmatprep.subr.bf16.mxu0 0
        %1300 = vmatpush1.bf16.xpose.msra.mxu0 0
        %1301 = vmatprep.subr.bf16.mxu0 0
        %1302 = vmatpush1.bf16.xpose.msra.mxu0 0
        %1303 = vmatprep.subr.bf16.mxu0 0
        %1304 = vmatpush1.bf16.xpose.msra.mxu0 0
        %1305 = vmatprep.subr.bf16.mxu0 0
        %1306 = vmatpush1.bf16.xpose.msra.mxu0 0
        %1307 = vmatprep.subr.bf16.mxu0 0
        %1308 = vmatpush1.bf16.xpose.msra.mxu0 0
        %1309 = vmatprep.subr.bf16.mxu0 0
        %1310 = vmatpush1.bf16.xpose.msra.mxu0 0
        %1311 = vmatprep.subr.bf16.mxu0 0
        %1312 = vmatpush1.bf16.xpose.msra.mxu0 %v1295
        %1313 = vmatprep.subr.bf16.mxu0 0
        %1314 = vmatpush2.bf16.xpose.msra.mxu0 0
        %1315 = vmatprep.subr.bf16.mxu0 0
        %1316 = vmatpush2.bf16.xpose.msra.mxu0 0
        %1317 = vmatprep.subr.bf16.mxu0 0
        %1318 = vmatpush2.bf16.xpose.msra.mxu0 0
        %1319 = vmatprep.subr.bf16.mxu0 0
        %1320 = vmatpush2.bf16.xpose.msra.mxu0 0
        %1321 = vmatprep.subr.bf16.mxu0 0
        %1322 = vmatpush2.bf16.xpose.msra.mxu0 0
        %1323 = vmatprep.subr.bf16.mxu0 0
        %1324 = vmatpush2.bf16.xpose.msra.mxu0 0
        %1325 = vmatprep.subr.bf16.mxu0 0
        %1326 = vmatpush2.bf16.xpose.msra.mxu0 0
        %1327 = vmatprep.subr.bf16.mxu0 0
        %1328 = vmatpush2.bf16.xpose.msra.mxu0 0
        %1329 = vmatprep.mubr.bf16.mxu0 0
        %1330 = vmatmul.mubr.bf16.gmra.mxu0 %v1292
        %v1331 = vpop.f32.mrf.mxu0
        %v1332 = vadd.f32 0.0, %v1331
        %v1333 = vpop.f32.mrf.mxu0
        %v1334 = vpop.f32.mrf.mxu0
        %v1335 = vadd.f32 0.0, %v1334
        %v1336 = vpop.f32.mrf.mxu0
        %1337 = vdwg.mxu0
        %1339 = vrot.lane.b32.xlu0 %v714, 96
        %v1340 = vpop.permute.xlu0 %1339
        %1342 = vrot.lane.b32.xlu0 %v715, 96
        %v1343 = vpop.permute.xlu0 %1342
        %v1345 = vsel %vm717, %v1340, 0
        %v1348 = vsel %vm717, %v1343, 0
        %1350 = vmatprep.subr.bf16.mxu0 0
        %1351 = vmatpush1.bf16.xpose.msra.mxu0 0
        %1352 = vmatprep.subr.bf16.mxu0 0
        %1353 = vmatpush1.bf16.xpose.msra.mxu0 0
        %1354 = vmatprep.subr.bf16.mxu0 0
        %1355 = vmatpush1.bf16.xpose.msra.mxu0 0
        %1356 = vmatprep.subr.bf16.mxu0 0
        %1357 = vmatpush1.bf16.xpose.msra.mxu0 0
        %1358 = vmatprep.subr.bf16.mxu0 0
        %1359 = vmatpush1.bf16.xpose.msra.mxu0 0
        %1360 = vmatprep.subr.bf16.mxu0 0
        %1361 = vmatpush1.bf16.xpose.msra.mxu0 0
        %1362 = vmatprep.subr.bf16.mxu0 0
        %1363 = vmatpush1.bf16.xpose.msra.mxu0 0
        %1364 = vmatprep.subr.bf16.mxu0 0
        %1365 = vmatpush1.bf16.xpose.msra.mxu0 %v1348
        %1366 = vmatprep.subr.bf16.mxu0 0
        %1367 = vmatpush2.bf16.xpose.msra.mxu0 0
        %1368 = vmatprep.subr.bf16.mxu0 0
        %1369 = vmatpush2.bf16.xpose.msra.mxu0 0
        %1370 = vmatprep.subr.bf16.mxu0 0
        %1371 = vmatpush2.bf16.xpose.msra.mxu0 0
        %1372 = vmatprep.subr.bf16.mxu0 0
        %1373 = vmatpush2.bf16.xpose.msra.mxu0 0
        %1374 = vmatprep.subr.bf16.mxu0 0
        %1375 = vmatpush2.bf16.xpose.msra.mxu0 0
        %1376 = vmatprep.subr.bf16.mxu0 0
        %1377 = vmatpush2.bf16.xpose.msra.mxu0 0
        %1378 = vmatprep.subr.bf16.mxu0 0
        %1379 = vmatpush2.bf16.xpose.msra.mxu0 0
        %1380 = vmatprep.subr.bf16.mxu0 0
        %1381 = vmatpush2.bf16.xpose.msra.mxu0 0
        %1382 = vmatprep.mubr.bf16.mxu0 0
        %1383 = vmatmul.mubr.bf16.gmra.mxu0 %v1345
        %v1384 = vpop.f32.mrf.mxu0
        %v1385 = vadd.f32 0.0, %v1384
        %v1386 = vpop.f32.mrf.mxu0
        %v1387 = vpop.f32.mrf.mxu0
        %v1388 = vadd.f32 0.0, %v1387
        %v1389 = vpop.f32.mrf.mxu0
        %1390 = vdwg.mxu0
        %v1391 = vsel %vm906, %v1226, -inf
        %1392 = vmax.xlane.f32.xlu0 %v1391
        %v1393 = vpop.xlane.xlu0 %1392
        %v1394 = vsel %vm906, %v1229, -inf
        %1395 = vmax.xlane.f32.xlu0 %v1394
        %v1396 = vpop.xlane.xlu0 %1395
        %v1397 = vsel %vm906, %v1279, -inf
        %1398 = vmax.xlane.f32.xlu0 %v1397
        %v1399 = vpop.xlane.xlu0 %1398
        %v1400 = vsel %vm906, %v1282, -inf
        %1401 = vmax.xlane.f32.xlu0 %v1400
        %v1402 = vpop.xlane.xlu0 %1401
        %v1403 = vsel %vm906, %v1332, -inf
        %1404 = vmax.xlane.f32.xlu0 %v1403
        %v1405 = vpop.xlane.xlu0 %1404
        %v1406 = vsel %vm906, %v1335, -inf
        %1407 = vmax.xlane.f32.xlu0 %v1406
        %v1408 = vpop.xlane.xlu0 %1407
        %v1409 = vsel %vm906, %v1385, -inf
        %1410 = vmax.xlane.f32.xlu0 %v1409
        %v1411 = vpop.xlane.xlu0 %1410
        %v1412 = vsel %vm906, %v1388, -inf
        %1413 = vmax.xlane.f32.xlu0 %v1412
        %v1414 = vpop.xlane.xlu0 %1413
        %v1415 = vsub.f32 %v1226, %v1393
        %v1416 = vsub.f32 %v1229, %v1396
        %v1417 = vsub.f32 %v1279, %v1399
        %v1418 = vsub.f32 %v1282, %v1402
        %v1419 = vsub.f32 %v1332, %v1405
        %v1420 = vsub.f32 %v1335, %v1408
        %v1421 = vsub.f32 %v1385, %v1411
        %v1422 = vsub.f32 %v1388, %v1414
        %v1423 = vmul.f32 %v1415, 1.442695
        %v1424 = vpow.pop %v1423
        %v1425 = vmul.f32 %v1416, 1.442695
        %v1426 = vpow.pop %v1425
        %v1427 = vmul.f32 %v1417, 1.442695
        %v1428 = vpow.pop %v1427
        %v1429 = vmul.f32 %v1418, 1.442695
        %v1430 = vpow.pop %v1429
        %v1431 = vmul.f32 %v1419, 1.442695
        %v1432 = vpow.pop %v1431
        %v1433 = vmul.f32 %v1420, 1.442695
        %v1434 = vpow.pop %v1433
        %v1435 = vmul.f32 %v1421, 1.442695
        %v1436 = vpow.pop %v1435
        %v1437 = vmul.f32 %v1422, 1.442695
        %v1438 = vpow.pop %v1437
        %v1439 = vsel %vm906, %v1424, 0.0
        %1440 = vadd.xlane.f32.xlu0 %v1439
        %v1441 = vpop.xlane.xlu0 %1440
        %v1442 = vsel %vm906, %v1426, 0.0
        %1443 = vadd.xlane.f32.xlu0 %v1442
        %v1444 = vpop.xlane.xlu0 %1443
        %v1445 = vsel %vm906, %v1428, 0.0
        %1446 = vadd.xlane.f32.xlu0 %v1445
        %v1447 = vpop.xlane.xlu0 %1446
        %v1448 = vsel %vm906, %v1430, 0.0
        %1449 = vadd.xlane.f32.xlu0 %v1448
        %v1450 = vpop.xlane.xlu0 %1449
        %v1451 = vsel %vm906, %v1432, 0.0
        %1452 = vadd.xlane.f32.xlu0 %v1451
        %v1453 = vpop.xlane.xlu0 %1452
        %v1454 = vsel %vm906, %v1434, 0.0
        %1455 = vadd.xlane.f32.xlu0 %v1454
        %v1456 = vpop.xlane.xlu0 %1455
        %v1457 = vsel %vm906, %v1436, 0.0
        %1458 = vadd.xlane.f32.xlu0 %v1457
        %v1459 = vpop.xlane.xlu0 %1458
        %v1460 = vsel %vm906, %v1438, 0.0
        %1461 = vadd.xlane.f32.xlu0 %v1460
        %v1462 = vpop.xlane.xlu0 %1461
        %v1463 = vrcp.pop %v1441
        %v1464 = vmul.f32 %v1424, %v1463
        %v1465 = vrcp.pop %v1444
        %v1466 = vmul.f32 %v1426, %v1465
        %v1467 = vrcp.pop %v1447
        %v1468 = vmul.f32 %v1428, %v1467
        %v1469 = vrcp.pop %v1450
        %v1470 = vmul.f32 %v1430, %v1469
        %v1471 = vrcp.pop %v1453
        %v1472 = vmul.f32 %v1432, %v1471
        %v1473 = vrcp.pop %v1456
        %v1474 = vmul.f32 %v1434, %v1473
        %v1475 = vrcp.pop %v1459
        %v1476 = vmul.f32 %v1436, %v1475
        %v1477 = vrcp.pop %v1462
        %v1478 = vmul.f32 %v1438, %v1477
        %v1479 = vpack.c.bf16 %v1466, %v1464
        %v1480 = vpack.c.bf16 %v1470, %v1468
        %v1481 = vpack.c.bf16 %v1474, %v1472
        %v1482 = vpack.c.bf16 %v1478, %v1476
        %1484 = vrot.lane.b32.xlu0 %v707, 96
        %v1485 = vpop.permute.xlu0 %1484
        %v1488 = vsel %vm906, %v1479, 0
        %1490 = vmatprep.subr.bf16.mxu0 0
        %1491 = vmatpush1.bf16.msra.mxu0 0
        %1492 = vmatprep.subr.bf16.mxu0 0
        %1493 = vmatpush1.bf16.msra.mxu0 0
        %1494 = vmatprep.subr.bf16.mxu0 0
        %1495 = vmatpush1.bf16.msra.mxu0 0
        %1496 = vmatprep.subr.bf16.mxu0 0
        %1497 = vmatpush1.bf16.msra.mxu0 0
        %1498 = vmatprep.subr.bf16.mxu0 0
        %1499 = vmatpush1.bf16.msra.mxu0 0
        %1500 = vmatprep.subr.bf16.mxu0 0
        %1501 = vmatpush1.bf16.msra.mxu0 0
        %1502 = vmatprep.subr.bf16.mxu0 0
        %1503 = vmatpush1.bf16.msra.mxu0 0
        %1504 = vmatprep.subr.bf16.mxu0 0
        %1505 = vmatpush1.bf16.msra.mxu0 %v1485
        %1506 = vmatprep.subr.bf16.mxu0 0
        %1507 = vmatpush2.bf16.msra.mxu0 0
        %1508 = vmatprep.subr.bf16.mxu0 0
        %1509 = vmatpush2.bf16.msra.mxu0 0
        %1510 = vmatprep.subr.bf16.mxu0 0
        %1511 = vmatpush2.bf16.msra.mxu0 0
        %1512 = vmatprep.subr.bf16.mxu0 0
        %1513 = vmatpush2.bf16.msra.mxu0 0
        %1514 = vmatprep.subr.bf16.mxu0 0
        %1515 = vmatpush2.bf16.msra.mxu0 0
        %1516 = vmatprep.subr.bf16.mxu0 0
        %1517 = vmatpush2.bf16.msra.mxu0 0
        %1518 = vmatprep.subr.bf16.mxu0 0
        %1519 = vmatpush2.bf16.msra.mxu0 0
        %1520 = vmatprep.subr.bf16.mxu0 0
        %1521 = vmatpush2.bf16.msra.mxu0 0
        %1522 = vmatprep.mubr.bf16.mxu0 0
        %1523 = vmatmul.mubr.bf16.gmra.mxu0 %v1488
        %v1524 = vpop.f32.mrf.mxu0
        %v1525 = vadd.f32 0.0, %v1524
        %v1526 = vpop.f32.mrf.mxu0
        %v1527 = vpop.f32.mrf.mxu0
        %v1528 = vadd.f32 0.0, %v1527
        %v1529 = vpop.f32.mrf.mxu0
        %1530 = vdwg.mxu0
        %1532 = vrot.lane.b32.xlu0 %v710, 96
        %v1533 = vpop.permute.xlu0 %1532
        %v1536 = vsel %vm906, %v1480, 0
        %1538 = vmatprep.subr.bf16.mxu0 0
        %1539 = vmatpush1.bf16.msra.mxu0 0
        %1540 = vmatprep.subr.bf16.mxu0 0
        %1541 = vmatpush1.bf16.msra.mxu0 0
        %1542 = vmatprep.subr.bf16.mxu0 0
        %1543 = vmatpush1.bf16.msra.mxu0 0
        %1544 = vmatprep.subr.bf16.mxu0 0
        %1545 = vmatpush1.bf16.msra.mxu0 0
        %1546 = vmatprep.subr.bf16.mxu0 0
        %1547 = vmatpush1.bf16.msra.mxu0 0
        %1548 = vmatprep.subr.bf16.mxu0 0
        %1549 = vmatpush1.bf16.msra.mxu0 0
        %1550 = vmatprep.subr.bf16.mxu0 0
        %1551 = vmatpush1.bf16.msra.mxu0 0
        %1552 = vmatprep.subr.bf16.mxu0 0
        %1553 = vmatpush1.bf16.msra.mxu0 %v1533
        %1554 = vmatprep.subr.bf16.mxu0 0
        %1555 = vmatpush2.bf16.msra.mxu0 0
        %1556 = vmatprep.subr.bf16.mxu0 0
        %1557 = vmatpush2.bf16.msra.mxu0 0
        %1558 = vmatprep.subr.bf16.mxu0 0
        %1559 = vmatpush2.bf16.msra.mxu0 0
        %1560 = vmatprep.subr.bf16.mxu0 0
        %1561 = vmatpush2.bf16.msra.mxu0 0
        %1562 = vmatprep.subr.bf16.mxu0 0
        %1563 = vmatpush2.bf16.msra.mxu0 0
        %1564 = vmatprep.subr.bf16.mxu0 0
        %1565 = vmatpush2.bf16.msra.mxu0 0
        %1566 = vmatprep.subr.bf16.mxu0 0
        %1567 = vmatpush2.bf16.msra.mxu0 0
        %1568 = vmatprep.subr.bf16.mxu0 0
        %1569 = vmatpush2.bf16.msra.mxu0 0
        %1570 = vmatprep.mubr.bf16.mxu0 0
        %1571 = vmatmul.mubr.bf16.gmra.mxu0 %v1536
        %v1572 = vpop.f32.mrf.mxu0
        %v1573 = vadd.f32 0.0, %v1572
        %v1574 = vpop.f32.mrf.mxu0
        %v1575 = vpop.f32.mrf.mxu0
        %v1576 = vadd.f32 0.0, %v1575
        %v1577 = vpop.f32.mrf.mxu0
        %1578 = vdwg.mxu0
        %1580 = vrot.lane.b32.xlu0 %v713, 96
        %v1581 = vpop.permute.xlu0 %1580
        %v1584 = vsel %vm906, %v1481, 0
        %1586 = vmatprep.subr.bf16.mxu0 0
        %1587 = vmatpush1.bf16.msra.mxu0 0
        %1588 = vmatprep.subr.bf16.mxu0 0
        %1589 = vmatpush1.bf16.msra.mxu0 0
        %1590 = vmatprep.subr.bf16.mxu0 0
        %1591 = vmatpush1.bf16.msra.mxu0 0
        %1592 = vmatprep.subr.bf16.mxu0 0
        %1593 = vmatpush1.bf16.msra.mxu0 0
        %1594 = vmatprep.subr.bf16.mxu0 0
        %1595 = vmatpush1.bf16.msra.mxu0 0
        %1596 = vmatprep.subr.bf16.mxu0 0
        %1597 = vmatpush1.bf16.msra.mxu0 0
        %1598 = vmatprep.subr.bf16.mxu0 0
        %1599 = vmatpush1.bf16.msra.mxu0 0
        %1600 = vmatprep.subr.bf16.mxu0 0
        %1601 = vmatpush1.bf16.msra.mxu0 %v1581
        %1602 = vmatprep.subr.bf16.mxu0 0
        %1603 = vmatpush2.bf16.msra.mxu0 0
        %1604 = vmatprep.subr.bf16.mxu0 0
        %1605 = vmatpush2.bf16.msra.mxu0 0
        %1606 = vmatprep.subr.bf16.mxu0 0
        %1607 = vmatpush2.bf16.msra.mxu0 0
        %1608 = vmatprep.subr.bf16.mxu0 0
        %1609 = vmatpush2.bf16.msra.mxu0 0
        %1610 = vmatprep.subr.bf16.mxu0 0
        %1611 = vmatpush2.bf16.msra.mxu0 0
        %1612 = vmatprep.subr.bf16.mxu0 0
        %1613 = vmatpush2.bf16.msra.mxu0 0
        %1614 = vmatprep.subr.bf16.mxu0 0
        %1615 = vmatpush2.bf16.msra.mxu0 0
        %1616 = vmatprep.subr.bf16.mxu0 0
        %1617 = vmatpush2.bf16.msra.mxu0 0
        %1618 = vmatprep.mubr.bf16.mxu0 0
        %1619 = vmatmul.mubr.bf16.gmra.mxu0 %v1584
        %v1620 = vpop.f32.mrf.mxu0
        %v1621 = vadd.f32 0.0, %v1620
        %v1622 = vpop.f32.mrf.mxu0
        %v1623 = vpop.f32.mrf.mxu0
        %v1624 = vadd.f32 0.0, %v1623
        %v1625 = vpop.f32.mrf.mxu0
        %1626 = vdwg.mxu0
        %1628 = vrot.lane.b32.xlu0 %v716, 96
        %v1629 = vpop.permute.xlu0 %1628
        %v1632 = vsel %vm906, %v1482, 0
        %1634 = vmatprep.subr.bf16.mxu0 0
        %1635 = vmatpush1.bf16.msra.mxu0 0
        %1636 = vmatprep.subr.bf16.mxu0 0
        %1637 = vmatpush1.bf16.msra.mxu0 0
        %1638 = vmatprep.subr.bf16.mxu0 0
        %1639 = vmatpush1.bf16.msra.mxu0 0
        %1640 = vmatprep.subr.bf16.mxu0 0
        %1641 = vmatpush1.bf16.msra.mxu0 0
        %1642 = vmatprep.subr.bf16.mxu0 0
        %1643 = vmatpush1.bf16.msra.mxu0 0
        %1644 = vmatprep.subr.bf16.mxu0 0
        %1645 = vmatpush1.bf16.msra.mxu0 0
        %1646 = vmatprep.subr.bf16.mxu0 0
        %1647 = vmatpush1.bf16.msra.mxu0 0
        %1648 = vmatprep.subr.bf16.mxu0 0
        %1649 = vmatpush1.bf16.msra.mxu0 %v1629
        %1650 = vmatprep.subr.bf16.mxu0 0
        %1651 = vmatpush2.bf16.msra.mxu0 0
        %1652 = vmatprep.subr.bf16.mxu0 0
        %1653 = vmatpush2.bf16.msra.mxu0 0
        %1654 = vmatprep.subr.bf16.mxu0 0
        %1655 = vmatpush2.bf16.msra.mxu0 0
        %1656 = vmatprep.subr.bf16.mxu0 0
        %1657 = vmatpush2.bf16.msra.mxu0 0
        %1658 = vmatprep.subr.bf16.mxu0 0
        %1659 = vmatpush2.bf16.msra.mxu0 0
        %1660 = vmatprep.subr.bf16.mxu0 0
        %1661 = vmatpush2.bf16.msra.mxu0 0
        %1662 = vmatprep.subr.bf16.mxu0 0
        %1663 = vmatpush2.bf16.msra.mxu0 0
        %1664 = vmatprep.subr.bf16.mxu0 0
        %1665 = vmatpush2.bf16.msra.mxu0 0
        %1666 = vmatprep.mubr.bf16.mxu0 0
        %1667 = vmatmul.mubr.bf16.gmra.mxu0 %v1632
        %v1668 = vpop.f32.mrf.mxu0
        %v1669 = vadd.f32 0.0, %v1668
        %v1670 = vpop.f32.mrf.mxu0
        %v1671 = vpop.f32.mrf.mxu0
        %v1672 = vadd.f32 0.0, %v1671
        %v1673 = vpop.f32.mrf.mxu0
        %1674 = vdwg.mxu0
        %v1675 = vpack.c.bf16 %v1528, %v1525
        %v1676 = vpack.c.bf16 %v1576, %v1573
        %v1677 = vpack.c.bf16 %v1624, %v1621
        %v1678 = vpack.c.bf16 %v1672, %v1669
        %1679 = vrot.lane.b32.xlu0 %v705, 64
        %v1680 = vpop.permute.xlu0 %1679
        %1681 = vrot.lane.b32.xlu0 %v706, 64
        %v1682 = vpop.permute.xlu0 %1681
        %v1684 = vsel %vm717, %v1680, 0
        %v1687 = vsel %vm717, %v1682, 0
        %1689 = vmatprep.subr.bf16.mxu0 0
        %1690 = vmatpush1.bf16.xpose.msra.mxu0 0
        %1691 = vmatprep.subr.bf16.mxu0 0
        %1692 = vmatpush1.bf16.xpose.msra.mxu0 0
        %1693 = vmatprep.subr.bf16.mxu0 0
        %1694 = vmatpush1.bf16.xpose.msra.mxu0 0
        %1695 = vmatprep.subr.bf16.mxu0 0
        %1696 = vmatpush1.bf16.xpose.msra.mxu0 0
        %1697 = vmatprep.subr.bf16.mxu0 0
        %1698 = vmatpush1.bf16.xpose.msra.mxu0 0
        %1699 = vmatprep.subr.bf16.mxu0 0
        %1700 = vmatpush1.bf16.xpose.msra.mxu0 0
        %1701 = vmatprep.subr.bf16.mxu0 0
        %1702 = vmatpush1.bf16.xpose.msra.mxu0 0
        %1703 = vmatprep.subr.bf16.mxu0 0
        %1704 = vmatpush1.bf16.xpose.msra.mxu0 %v1687
        %1705 = vmatprep.subr.bf16.mxu0 0
        %1706 = vmatpush2.bf16.xpose.msra.mxu0 0
        %1707 = vmatprep.subr.bf16.mxu0 0
        %1708 = vmatpush2.bf16.xpose.msra.mxu0 0
        %1709 = vmatprep.subr.bf16.mxu0 0
        %1710 = vmatpush2.bf16.xpose.msra.mxu0 0
        %1711 = vmatprep.subr.bf16.mxu0 0
        %1712 = vmatpush2.bf16.xpose.msra.mxu0 0
        %1713 = vmatprep.subr.bf16.mxu0 0
        %1714 = vmatpush2.bf16.xpose.msra.mxu0 0
        %1715 = vmatprep.subr.bf16.mxu0 0
        %1716 = vmatpush2.bf16.xpose.msra.mxu0 0
        %1717 = vmatprep.subr.bf16.mxu0 0
        %1718 = vmatpush2.bf16.xpose.msra.mxu0 0
        %1719 = vmatprep.subr.bf16.mxu0 0
        %1720 = vmatpush2.bf16.xpose.msra.mxu0 0
        %1721 = vmatprep.mubr.bf16.mxu0 0
        %1722 = vmatmul.mubr.bf16.gmra.mxu0 %v1684
        %v1723 = vpop.f32.mrf.mxu0
        %v1724 = vadd.f32 0.0, %v1723
        %v1725 = vpop.f32.mrf.mxu0
        %v1726 = vpop.f32.mrf.mxu0
        %v1727 = vadd.f32 0.0, %v1726
        %v1728 = vpop.f32.mrf.mxu0
        %1729 = vdwg.mxu0
        %1730 = vrot.lane.b32.xlu0 %v708, 64
        %v1731 = vpop.permute.xlu0 %1730
        %1732 = vrot.lane.b32.xlu0 %v709, 64
        %v1733 = vpop.permute.xlu0 %1732
        %v1735 = vsel %vm717, %v1731, 0
        %v1738 = vsel %vm717, %v1733, 0
        %1740 = vmatprep.subr.bf16.mxu0 0
        %1741 = vmatpush1.bf16.xpose.msra.mxu0 0
        %1742 = vmatprep.subr.bf16.mxu0 0
        %1743 = vmatpush1.bf16.xpose.msra.mxu0 0
        %1744 = vmatprep.subr.bf16.mxu0 0
        %1745 = vmatpush1.bf16.xpose.msra.mxu0 0
        %1746 = vmatprep.subr.bf16.mxu0 0
        %1747 = vmatpush1.bf16.xpose.msra.mxu0 0
        %1748 = vmatprep.subr.bf16.mxu0 0
        %1749 = vmatpush1.bf16.xpose.msra.mxu0 0
        %1750 = vmatprep.subr.bf16.mxu0 0
        %1751 = vmatpush1.bf16.xpose.msra.mxu0 0
        %1752 = vmatprep.subr.bf16.mxu0 0
        %1753 = vmatpush1.bf16.xpose.msra.mxu0 0
        %1754 = vmatprep.subr.bf16.mxu0 0
        %1755 = vmatpush1.bf16.xpose.msra.mxu0 %v1738
        %1756 = vmatprep.subr.bf16.mxu0 0
        %1757 = vmatpush2.bf16.xpose.msra.mxu0 0
        %1758 = vmatprep.subr.bf16.mxu0 0
        %1759 = vmatpush2.bf16.xpose.msra.mxu0 0
        %1760 = vmatprep.subr.bf16.mxu0 0
        %1761 = vmatpush2.bf16.xpose.msra.mxu0 0
        %1762 = vmatprep.subr.bf16.mxu0 0
        %1763 = vmatpush2.bf16.xpose.msra.mxu0 0
        %1764 = vmatprep.subr.bf16.mxu0 0
        %1765 = vmatpush2.bf16.xpose.msra.mxu0 0
        %1766 = vmatprep.subr.bf16.mxu0 0
        %1767 = vmatpush2.bf16.xpose.msra.mxu0 0
        %1768 = vmatprep.subr.bf16.mxu0 0
        %1769 = vmatpush2.bf16.xpose.msra.mxu0 0
        %1770 = vmatprep.subr.bf16.mxu0 0
        %1771 = vmatpush2.bf16.xpose.msra.mxu0 0
        %1772 = vmatprep.mubr.bf16.mxu0 0
        %1773 = vmatmul.mubr.bf16.gmra.mxu0 %v1735
        %v1774 = vpop.f32.mrf.mxu0
        %v1775 = vadd.f32 0.0, %v1774
        %v1776 = vpop.f32.mrf.mxu0
        %v1777 = vpop.f32.mrf.mxu0
        %v1778 = vadd.f32 0.0, %v1777
        %v1779 = vpop.f32.mrf.mxu0
        %1780 = vdwg.mxu0
        %1781 = vrot.lane.b32.xlu0 %v711, 64
        %v1782 = vpop.permute.xlu0 %1781
        %1783 = vrot.lane.b32.xlu0 %v712, 64
        %v1784 = vpop.permute.xlu0 %1783
        %v1786 = vsel %vm717, %v1782, 0
        %v1789 = vsel %vm717, %v1784, 0
        %1791 = vmatprep.subr.bf16.mxu0 0
        %1792 = vmatpush1.bf16.xpose.msra.mxu0 0
        %1793 = vmatprep.subr.bf16.mxu0 0
        %1794 = vmatpush1.bf16.xpose.msra.mxu0 0
        %1795 = vmatprep.subr.bf16.mxu0 0
        %1796 = vmatpush1.bf16.xpose.msra.mxu0 0
        %1797 = vmatprep.subr.bf16.mxu0 0
        %1798 = vmatpush1.bf16.xpose.msra.mxu0 0
        %1799 = vmatprep.subr.bf16.mxu0 0
        %1800 = vmatpush1.bf16.xpose.msra.mxu0 0
        %1801 = vmatprep.subr.bf16.mxu0 0
        %1802 = vmatpush1.bf16.xpose.msra.mxu0 0
        %1803 = vmatprep.subr.bf16.mxu0 0
        %1804 = vmatpush1.bf16.xpose.msra.mxu0 0
        %1805 = vmatprep.subr.bf16.mxu0 0
        %1806 = vmatpush1.bf16.xpose.msra.mxu0 %v1789
        %1807 = vmatprep.subr.bf16.mxu0 0
        %1808 = vmatpush2.bf16.xpose.msra.mxu0 0
        %1809 = vmatprep.subr.bf16.mxu0 0
        %1810 = vmatpush2.bf16.xpose.msra.mxu0 0
        %1811 = vmatprep.subr.bf16.mxu0 0
        %1812 = vmatpush2.bf16.xpose.msra.mxu0 0
        %1813 = vmatprep.subr.bf16.mxu0 0
        %1814 = vmatpush2.bf16.xpose.msra.mxu0 0
        %1815 = vmatprep.subr.bf16.mxu0 0
        %1816 = vmatpush2.bf16.xpose.msra.mxu0 0
        %1817 = vmatprep.subr.bf16.mxu0 0
        %1818 = vmatpush2.bf16.xpose.msra.mxu0 0
        %1819 = vmatprep.subr.bf16.mxu0 0
        %1820 = vmatpush2.bf16.xpose.msra.mxu0 0
        %1821 = vmatprep.subr.bf16.mxu0 0
        %1822 = vmatpush2.bf16.xpose.msra.mxu0 0
        %1823 = vmatprep.mubr.bf16.mxu0 0
        %1824 = vmatmul.mubr.bf16.gmra.mxu0 %v1786
        %v1825 = vpop.f32.mrf.mxu0
        %v1826 = vadd.f32 0.0, %v1825
        %v1827 = vpop.f32.mrf.mxu0
        %v1828 = vpop.f32.mrf.mxu0
        %v1829 = vadd.f32 0.0, %v1828
        %v1830 = vpop.f32.mrf.mxu0
        %1831 = vdwg.mxu0
        %1832 = vrot.lane.b32.xlu0 %v714, 64
        %v1833 = vpop.permute.xlu0 %1832
        %1834 = vrot.lane.b32.xlu0 %v715, 64
        %v1835 = vpop.permute.xlu0 %1834
        %v1837 = vsel %vm717, %v1833, 0
        %v1840 = vsel %vm717, %v1835, 0
        %1842 = vmatprep.subr.bf16.mxu0 0
        %1843 = vmatpush1.bf16.xpose.msra.mxu0 0
        %1844 = vmatprep.subr.bf16.mxu0 0
        %1845 = vmatpush1.bf16.xpose.msra.mxu0 0
        %1846 = vmatprep.subr.bf16.mxu0 0
        %1847 = vmatpush1.bf16.xpose.msra.mxu0 0
        %1848 = vmatprep.subr.bf16.mxu0 0
        %1849 = vmatpush1.bf16.xpose.msra.mxu0 0
        %1850 = vmatprep.subr.bf16.mxu0 0
        %1851 = vmatpush1.bf16.xpose.msra.mxu0 0
        %1852 = vmatprep.subr.bf16.mxu0 0
        %1853 = vmatpush1.bf16.xpose.msra.mxu0 0
        %1854 = vmatprep.subr.bf16.mxu0 0
        %1855 = vmatpush1.bf16.xpose.msra.mxu0 0
        %1856 = vmatprep.subr.bf16.mxu0 0
        %1857 = vmatpush1.bf16.xpose.msra.mxu0 %v1840
        %1858 = vmatprep.subr.bf16.mxu0 0
        %1859 = vmatpush2.bf16.xpose.msra.mxu0 0
        %1860 = vmatprep.subr.bf16.mxu0 0
        %1861 = vmatpush2.bf16.xpose.msra.mxu0 0
        %1862 = vmatprep.subr.bf16.mxu0 0
        %1863 = vmatpush2.bf16.xpose.msra.mxu0 0
        %1864 = vmatprep.subr.bf16.mxu0 0
        %1865 = vmatpush2.bf16.xpose.msra.mxu0 0
        %1866 = vmatprep.subr.bf16.mxu0 0
        %1867 = vmatpush2.bf16.xpose.msra.mxu0 0
        %1868 = vmatprep.subr.bf16.mxu0 0
        %1869 = vmatpush2.bf16.xpose.msra.mxu0 0
        %1870 = vmatprep.subr.bf16.mxu0 0
        %1871 = vmatpush2.bf16.xpose.msra.mxu0 0
        %1872 = vmatprep.subr.bf16.mxu0 0
        %1873 = vmatpush2.bf16.xpose.msra.mxu0 0
        %1874 = vmatprep.mubr.bf16.mxu0 0
        %1875 = vmatmul.mubr.bf16.gmra.mxu0 %v1837
        %v1876 = vpop.f32.mrf.mxu0
        %v1877 = vadd.f32 0.0, %v1876
        %v1878 = vpop.f32.mrf.mxu0
        %v1879 = vpop.f32.mrf.mxu0
        %v1880 = vadd.f32 0.0, %v1879
        %v1881 = vpop.f32.mrf.mxu0
        %1882 = vdwg.mxu0
        %v1883 = vsel %vm906, %v1724, -inf
        %1884 = vmax.xlane.f32.xlu0 %v1883
        %v1885 = vpop.xlane.xlu0 %1884
        %v1886 = vsel %vm906, %v1727, -inf
        %1887 = vmax.xlane.f32.xlu0 %v1886
        %v1888 = vpop.xlane.xlu0 %1887
        %v1889 = vsel %vm906, %v1775, -inf
        %1890 = vmax.xlane.f32.xlu0 %v1889
        %v1891 = vpop.xlane.xlu0 %1890
        %v1892 = vsel %vm906, %v1778, -inf
        %1893 = vmax.xlane.f32.xlu0 %v1892
        %v1894 = vpop.xlane.xlu0 %1893
        %v1895 = vsel %vm906, %v1826, -inf
        %1896 = vmax.xlane.f32.xlu0 %v1895
        %v1897 = vpop.xlane.xlu0 %1896
        %v1898 = vsel %vm906, %v1829, -inf
        %1899 = vmax.xlane.f32.xlu0 %v1898
        %v1900 = vpop.xlane.xlu0 %1899
        %v1901 = vsel %vm906, %v1877, -inf
        %1902 = vmax.xlane.f32.xlu0 %v1901
        %v1903 = vpop.xlane.xlu0 %1902
        %v1904 = vsel %vm906, %v1880, -inf
        %1905 = vmax.xlane.f32.xlu0 %v1904
        %v1906 = vpop.xlane.xlu0 %1905
        %v1907 = vsub.f32 %v1724, %v1885
        %v1908 = vsub.f32 %v1727, %v1888
        %v1909 = vsub.f32 %v1775, %v1891
        %v1910 = vsub.f32 %v1778, %v1894
        %v1911 = vsub.f32 %v1826, %v1897
        %v1912 = vsub.f32 %v1829, %v1900
        %v1913 = vsub.f32 %v1877, %v1903
        %v1914 = vsub.f32 %v1880, %v1906
        %v1915 = vmul.f32 %v1907, 1.442695
        %v1916 = vpow.pop %v1915
        %v1917 = vmul.f32 %v1908, 1.442695
        %v1918 = vpow.pop %v1917
        %v1919 = vmul.f32 %v1909, 1.442695
        %v1920 = vpow.pop %v1919
        %v1921 = vmul.f32 %v1910, 1.442695
        %v1922 = vpow.pop %v1921
        %v1923 = vmul.f32 %v1911, 1.442695
        %v1924 = vpow.pop %v1923
        %v1925 = vmul.f32 %v1912, 1.442695
        %v1926 = vpow.pop %v1925
        %v1927 = vmul.f32 %v1913, 1.442695
        %v1928 = vpow.pop %v1927
        %v1929 = vmul.f32 %v1914, 1.442695
        %v1930 = vpow.pop %v1929
        %v1931 = vsel %vm906, %v1916, 0.0
        %1932 = vadd.xlane.f32.xlu0 %v1931
        %v1933 = vpop.xlane.xlu0 %1932
        %v1934 = vsel %vm906, %v1918, 0.0
        %1935 = vadd.xlane.f32.xlu0 %v1934
        %v1936 = vpop.xlane.xlu0 %1935
        %v1937 = vsel %vm906, %v1920, 0.0
        %1938 = vadd.xlane.f32.xlu0 %v1937
        %v1939 = vpop.xlane.xlu0 %1938
        %v1940 = vsel %vm906, %v1922, 0.0
        %1941 = vadd.xlane.f32.xlu0 %v1940
        %v1942 = vpop.xlane.xlu0 %1941
        %v1943 = vsel %vm906, %v1924, 0.0
        %1944 = vadd.xlane.f32.xlu0 %v1943
        %v1945 = vpop.xlane.xlu0 %1944
        %v1946 = vsel %vm906, %v1926, 0.0
        %1947 = vadd.xlane.f32.xlu0 %v1946
        %v1948 = vpop.xlane.xlu0 %1947
        %v1949 = vsel %vm906, %v1928, 0.0
        %1950 = vadd.xlane.f32.xlu0 %v1949
        %v1951 = vpop.xlane.xlu0 %1950
        %v1952 = vsel %vm906, %v1930, 0.0
        %1953 = vadd.xlane.f32.xlu0 %v1952
        %v1954 = vpop.xlane.xlu0 %1953
        %v1955 = vrcp.pop %v1933
        %v1956 = vmul.f32 %v1916, %v1955
        %v1957 = vrcp.pop %v1936
        %v1958 = vmul.f32 %v1918, %v1957
        %v1959 = vrcp.pop %v1939
        %v1960 = vmul.f32 %v1920, %v1959
        %v1961 = vrcp.pop %v1942
        %v1962 = vmul.f32 %v1922, %v1961
        %v1963 = vrcp.pop %v1945
        %v1964 = vmul.f32 %v1924, %v1963
        %v1965 = vrcp.pop %v1948
        %v1966 = vmul.f32 %v1926, %v1965
        %v1967 = vrcp.pop %v1951
        %v1968 = vmul.f32 %v1928, %v1967
        %v1969 = vrcp.pop %v1954
        %v1970 = vmul.f32 %v1930, %v1969
        %v1971 = vpack.c.bf16 %v1958, %v1956
        %v1972 = vpack.c.bf16 %v1962, %v1960
        %v1973 = vpack.c.bf16 %v1966, %v1964
        %v1974 = vpack.c.bf16 %v1970, %v1968
        %1975 = vrot.lane.b32.xlu0 %v707, 64
        %v1976 = vpop.permute.xlu0 %1975
        %v1979 = vsel %vm906, %v1971, 0
        %1981 = vmatprep.subr.bf16.mxu0 0
        %1982 = vmatpush1.bf16.msra.mxu0 0
        %1983 = vmatprep.subr.bf16.mxu0 0
        %1984 = vmatpush1.bf16.msra.mxu0 0
        %1985 = vmatprep.subr.bf16.mxu0 0
        %1986 = vmatpush1.bf16.msra.mxu0 0
        %1987 = vmatprep.subr.bf16.mxu0 0
        %1988 = vmatpush1.bf16.msra.mxu0 0
        %1989 = vmatprep.subr.bf16.mxu0 0
        %1990 = vmatpush1.bf16.msra.mxu0 0
        %1991 = vmatprep.subr.bf16.mxu0 0
        %1992 = vmatpush1.bf16.msra.mxu0 0
        %1993 = vmatprep.subr.bf16.mxu0 0
        %1994 = vmatpush1.bf16.msra.mxu0 0
        %1995 = vmatprep.subr.bf16.mxu0 0
        %1996 = vmatpush1.bf16.msra.mxu0 %v1976
        %1997 = vmatprep.subr.bf16.mxu0 0
        %1998 = vmatpush2.bf16.msra.mxu0 0
        %1999 = vmatprep.subr.bf16.mxu0 0
        %2000 = vmatpush2.bf16.msra.mxu0 0
        %2001 = vmatprep.subr.bf16.mxu0 0
        %2002 = vmatpush2.bf16.msra.mxu0 0
        %2003 = vmatprep.subr.bf16.mxu0 0
        %2004 = vmatpush2.bf16.msra.mxu0 0
        %2005 = vmatprep.subr.bf16.mxu0 0
        %2006 = vmatpush2.bf16.msra.mxu0 0
        %2007 = vmatprep.subr.bf16.mxu0 0
        %2008 = vmatpush2.bf16.msra.mxu0 0
        %2009 = vmatprep.subr.bf16.mxu0 0
        %2010 = vmatpush2.bf16.msra.mxu0 0
        %2011 = vmatprep.subr.bf16.mxu0 0
        %2012 = vmatpush2.bf16.msra.mxu0 0
        %2013 = vmatprep.mubr.bf16.mxu0 0
        %2014 = vmatmul.mubr.bf16.gmra.mxu0 %v1979
        %v2015 = vpop.f32.mrf.mxu0
        %v2016 = vadd.f32 0.0, %v2015
        %v2017 = vpop.f32.mrf.mxu0
        %v2018 = vpop.f32.mrf.mxu0
        %v2019 = vadd.f32 0.0, %v2018
        %v2020 = vpop.f32.mrf.mxu0
        %2021 = vdwg.mxu0
        %2022 = vrot.lane.b32.xlu0 %v710, 64
        %v2023 = vpop.permute.xlu0 %2022
        %v2026 = vsel %vm906, %v1972, 0
        %2028 = vmatprep.subr.bf16.mxu0 0
        %2029 = vmatpush1.bf16.msra.mxu0 0
        %2030 = vmatprep.subr.bf16.mxu0 0
        %2031 = vmatpush1.bf16.msra.mxu0 0
        %2032 = vmatprep.subr.bf16.mxu0 0
        %2033 = vmatpush1.bf16.msra.mxu0 0
        %2034 = vmatprep.subr.bf16.mxu0 0
        %2035 = vmatpush1.bf16.msra.mxu0 0
        %2036 = vmatprep.subr.bf16.mxu0 0
        %2037 = vmatpush1.bf16.msra.mxu0 0
        %2038 = vmatprep.subr.bf16.mxu0 0
        %2039 = vmatpush1.bf16.msra.mxu0 0
        %2040 = vmatprep.subr.bf16.mxu0 0
        %2041 = vmatpush1.bf16.msra.mxu0 0
        %2042 = vmatprep.subr.bf16.mxu0 0
        %2043 = vmatpush1.bf16.msra.mxu0 %v2023
        %2044 = vmatprep.subr.bf16.mxu0 0
        %2045 = vmatpush2.bf16.msra.mxu0 0
        %2046 = vmatprep.subr.bf16.mxu0 0
        %2047 = vmatpush2.bf16.msra.mxu0 0
        %2048 = vmatprep.subr.bf16.mxu0 0
        %2049 = vmatpush2.bf16.msra.mxu0 0
        %2050 = vmatprep.subr.bf16.mxu0 0
        %2051 = vmatpush2.bf16.msra.mxu0 0
        %2052 = vmatprep.subr.bf16.mxu0 0
        %2053 = vmatpush2.bf16.msra.mxu0 0
        %2054 = vmatprep.subr.bf16.mxu0 0
        %2055 = vmatpush2.bf16.msra.mxu0 0
        %2056 = vmatprep.subr.bf16.mxu0 0
        %2057 = vmatpush2.bf16.msra.mxu0 0
        %2058 = vmatprep.subr.bf16.mxu0 0
        %2059 = vmatpush2.bf16.msra.mxu0 0
        %2060 = vmatprep.mubr.bf16.mxu0 0
        %2061 = vmatmul.mubr.bf16.gmra.mxu0 %v2026
        %v2062 = vpop.f32.mrf.mxu0
        %v2063 = vadd.f32 0.0, %v2062
        %v2064 = vpop.f32.mrf.mxu0
        %v2065 = vpop.f32.mrf.mxu0
        %v2066 = vadd.f32 0.0, %v2065
        %v2067 = vpop.f32.mrf.mxu0
        %2068 = vdwg.mxu0
        %2069 = vrot.lane.b32.xlu0 %v713, 64
        %v2070 = vpop.permute.xlu0 %2069
        %v2073 = vsel %vm906, %v1973, 0
        %2075 = vmatprep.subr.bf16.mxu0 0
        %2076 = vmatpush1.bf16.msra.mxu0 0
        %2077 = vmatprep.subr.bf16.mxu0 0
        %2078 = vmatpush1.bf16.msra.mxu0 0
        %2079 = vmatprep.subr.bf16.mxu0 0
        %2080 = vmatpush1.bf16.msra.mxu0 0
        %2081 = vmatprep.subr.bf16.mxu0 0
        %2082 = vmatpush1.bf16.msra.mxu0 0
        %2083 = vmatprep.subr.bf16.mxu0 0
        %2084 = vmatpush1.bf16.msra.mxu0 0
        %2085 = vmatprep.subr.bf16.mxu0 0
        %2086 = vmatpush1.bf16.msra.mxu0 0
        %2087 = vmatprep.subr.bf16.mxu0 0
        %2088 = vmatpush1.bf16.msra.mxu0 0
        %2089 = vmatprep.subr.bf16.mxu0 0
        %2090 = vmatpush1.bf16.msra.mxu0 %v2070
        %2091 = vmatprep.subr.bf16.mxu0 0
        %2092 = vmatpush2.bf16.msra.mxu0 0
        %2093 = vmatprep.subr.bf16.mxu0 0
        %2094 = vmatpush2.bf16.msra.mxu0 0
        %2095 = vmatprep.subr.bf16.mxu0 0
        %2096 = vmatpush2.bf16.msra.mxu0 0
        %2097 = vmatprep.subr.bf16.mxu0 0
        %2098 = vmatpush2.bf16.msra.mxu0 0
        %2099 = vmatprep.subr.bf16.mxu0 0
        %2100 = vmatpush2.bf16.msra.mxu0 0
        %2101 = vmatprep.subr.bf16.mxu0 0
        %2102 = vmatpush2.bf16.msra.mxu0 0
        %2103 = vmatprep.subr.bf16.mxu0 0
        %2104 = vmatpush2.bf16.msra.mxu0 0
        %2105 = vmatprep.subr.bf16.mxu0 0
        %2106 = vmatpush2.bf16.msra.mxu0 0
        %2107 = vmatprep.mubr.bf16.mxu0 0
        %2108 = vmatmul.mubr.bf16.gmra.mxu0 %v2073
        %v2109 = vpop.f32.mrf.mxu0
        %v2110 = vadd.f32 0.0, %v2109
        %v2111 = vpop.f32.mrf.mxu0
        %v2112 = vpop.f32.mrf.mxu0
        %v2113 = vadd.f32 0.0, %v2112
        %v2114 = vpop.f32.mrf.mxu0
        %2115 = vdwg.mxu0
        %2116 = vrot.lane.b32.xlu0 %v716, 64
        %v2117 = vpop.permute.xlu0 %2116
        %v2120 = vsel %vm906, %v1974, 0
        %2122 = vmatprep.subr.bf16.mxu0 0
        %2123 = vmatpush1.bf16.msra.mxu0 0
        %2124 = vmatprep.subr.bf16.mxu0 0
        %2125 = vmatpush1.bf16.msra.mxu0 0
        %2126 = vmatprep.subr.bf16.mxu0 0
        %2127 = vmatpush1.bf16.msra.mxu0 0
        %2128 = vmatprep.subr.bf16.mxu0 0
        %2129 = vmatpush1.bf16.msra.mxu0 0
        %2130 = vmatprep.subr.bf16.mxu0 0
        %2131 = vmatpush1.bf16.msra.mxu0 0
        %2132 = vmatprep.subr.bf16.mxu0 0
        %2133 = vmatpush1.bf16.msra.mxu0 0
        %2134 = vmatprep.subr.bf16.mxu0 0
        %2135 = vmatpush1.bf16.msra.mxu0 0
        %2136 = vmatprep.subr.bf16.mxu0 0
        %2137 = vmatpush1.bf16.msra.mxu0 %v2117
        %2138 = vmatprep.subr.bf16.mxu0 0
        %2139 = vmatpush2.bf16.msra.mxu0 0
        %2140 = vmatprep.subr.bf16.mxu0 0
        %2141 = vmatpush2.bf16.msra.mxu0 0
        %2142 = vmatprep.subr.bf16.mxu0 0
        %2143 = vmatpush2.bf16.msra.mxu0 0
        %2144 = vmatprep.subr.bf16.mxu0 0
        %2145 = vmatpush2.bf16.msra.mxu0 0
        %2146 = vmatprep.subr.bf16.mxu0 0
        %2147 = vmatpush2.bf16.msra.mxu0 0
        %2148 = vmatprep.subr.bf16.mxu0 0
        %2149 = vmatpush2.bf16.msra.mxu0 0
        %2150 = vmatprep.subr.bf16.mxu0 0
        %2151 = vmatpush2.bf16.msra.mxu0 0
        %2152 = vmatprep.subr.bf16.mxu0 0
        %2153 = vmatpush2.bf16.msra.mxu0 0
        %2154 = vmatprep.mubr.bf16.mxu0 0
        %2155 = vmatmul.mubr.bf16.gmra.mxu0 %v2120
        %v2156 = vpop.f32.mrf.mxu0
        %v2157 = vadd.f32 0.0, %v2156
        %v2158 = vpop.f32.mrf.mxu0
        %v2159 = vpop.f32.mrf.mxu0
        %v2160 = vadd.f32 0.0, %v2159
        %v2161 = vpop.f32.mrf.mxu0
        %2162 = vdwg.mxu0
        %v2163 = vpack.c.bf16 %v2019, %v2016
        %v2164 = vpack.c.bf16 %v2066, %v2063
        %v2165 = vpack.c.bf16 %v2113, %v2110
        %v2166 = vpack.c.bf16 %v2160, %v2157
        %2167 = vrot.lane.b32.xlu0 %v705, 32
        %v2168 = vpop.permute.xlu0 %2167
        %2169 = vrot.lane.b32.xlu0 %v706, 32
        %v2170 = vpop.permute.xlu0 %2169
        %v2172 = vsel %vm717, %v2168, 0
        %v2175 = vsel %vm717, %v2170, 0
        %2177 = vmatprep.subr.bf16.mxu0 0
        %2178 = vmatpush1.bf16.xpose.msra.mxu0 0
        %2179 = vmatprep.subr.bf16.mxu0 0
        %2180 = vmatpush1.bf16.xpose.msra.mxu0 0
        %2181 = vmatprep.subr.bf16.mxu0 0
        %2182 = vmatpush1.bf16.xpose.msra.mxu0 0
        %2183 = vmatprep.subr.bf16.mxu0 0
        %2184 = vmatpush1.bf16.xpose.msra.mxu0 0
        %2185 = vmatprep.subr.bf16.mxu0 0
        %2186 = vmatpush1.bf16.xpose.msra.mxu0 0
        %2187 = vmatprep.subr.bf16.mxu0 0
        %2188 = vmatpush1.bf16.xpose.msra.mxu0 0
        %2189 = vmatprep.subr.bf16.mxu0 0
        %2190 = vmatpush1.bf16.xpose.msra.mxu0 0
        %2191 = vmatprep.subr.bf16.mxu0 0
        %2192 = vmatpush1.bf16.xpose.msra.mxu0 %v2175
        %2193 = vmatprep.subr.bf16.mxu0 0
        %2194 = vmatpush2.bf16.xpose.msra.mxu0 0
        %2195 = vmatprep.subr.bf16.mxu0 0
        %2196 = vmatpush2.bf16.xpose.msra.mxu0 0
        %2197 = vmatprep.subr.bf16.mxu0 0
        %2198 = vmatpush2.bf16.xpose.msra.mxu0 0
        %2199 = vmatprep.subr.bf16.mxu0 0
        %2200 = vmatpush2.bf16.xpose.msra.mxu0 0
        %2201 = vmatprep.subr.bf16.mxu0 0
        %2202 = vmatpush2.bf16.xpose.msra.mxu0 0
        %2203 = vmatprep.subr.bf16.mxu0 0
        %2204 = vmatpush2.bf16.xpose.msra.mxu0 0
        %2205 = vmatprep.subr.bf16.mxu0 0
        %2206 = vmatpush2.bf16.xpose.msra.mxu0 0
        %2207 = vmatprep.subr.bf16.mxu0 0
        %2208 = vmatpush2.bf16.xpose.msra.mxu0 0
        %2209 = vmatprep.mubr.bf16.mxu0 0
        %2210 = vmatmul.mubr.bf16.gmra.mxu0 %v2172
        %v2211 = vpop.f32.mrf.mxu0
        %v2212 = vadd.f32 0.0, %v2211
        %v2213 = vpop.f32.mrf.mxu0
        %v2214 = vpop.f32.mrf.mxu0
        %v2215 = vadd.f32 0.0, %v2214
        %v2216 = vpop.f32.mrf.mxu0
        %2217 = vdwg.mxu0
        %2218 = vrot.lane.b32.xlu0 %v708, 32
        %v2219 = vpop.permute.xlu0 %2218
        %2220 = vrot.lane.b32.xlu0 %v709, 32
        %v2221 = vpop.permute.xlu0 %2220
        %v2223 = vsel %vm717, %v2219, 0
        %v2226 = vsel %vm717, %v2221, 0
        %2228 = vmatprep.subr.bf16.mxu0 0
        %2229 = vmatpush1.bf16.xpose.msra.mxu0 0
        %2230 = vmatprep.subr.bf16.mxu0 0
        %2231 = vmatpush1.bf16.xpose.msra.mxu0 0
        %2232 = vmatprep.subr.bf16.mxu0 0
        %2233 = vmatpush1.bf16.xpose.msra.mxu0 0
        %2234 = vmatprep.subr.bf16.mxu0 0
        %2235 = vmatpush1.bf16.xpose.msra.mxu0 0
        %2236 = vmatprep.subr.bf16.mxu0 0
        %2237 = vmatpush1.bf16.xpose.msra.mxu0 0
        %2238 = vmatprep.subr.bf16.mxu0 0
        %2239 = vmatpush1.bf16.xpose.msra.mxu0 0
        %2240 = vmatprep.subr.bf16.mxu0 0
        %2241 = vmatpush1.bf16.xpose.msra.mxu0 0
        %2242 = vmatprep.subr.bf16.mxu0 0
        %2243 = vmatpush1.bf16.xpose.msra.mxu0 %v2226
        %2244 = vmatprep.subr.bf16.mxu0 0
        %2245 = vmatpush2.bf16.xpose.msra.mxu0 0
        %2246 = vmatprep.subr.bf16.mxu0 0
        %2247 = vmatpush2.bf16.xpose.msra.mxu0 0
        %2248 = vmatprep.subr.bf16.mxu0 0
        %2249 = vmatpush2.bf16.xpose.msra.mxu0 0
        %2250 = vmatprep.subr.bf16.mxu0 0
        %2251 = vmatpush2.bf16.xpose.msra.mxu0 0
        %2252 = vmatprep.subr.bf16.mxu0 0
        %2253 = vmatpush2.bf16.xpose.msra.mxu0 0
        %2254 = vmatprep.subr.bf16.mxu0 0
        %2255 = vmatpush2.bf16.xpose.msra.mxu0 0
        %2256 = vmatprep.subr.bf16.mxu0 0
        %2257 = vmatpush2.bf16.xpose.msra.mxu0 0
        %2258 = vmatprep.subr.bf16.mxu0 0
        %2259 = vmatpush2.bf16.xpose.msra.mxu0 0
        %2260 = vmatprep.mubr.bf16.mxu0 0
        %2261 = vmatmul.mubr.bf16.gmra.mxu0 %v2223
        %v2262 = vpop.f32.mrf.mxu0
        %v2263 = vadd.f32 0.0, %v2262
        %v2264 = vpop.f32.mrf.mxu0
        %v2265 = vpop.f32.mrf.mxu0
        %v2266 = vadd.f32 0.0, %v2265
        %v2267 = vpop.f32.mrf.mxu0
        %2268 = vdwg.mxu0
        %2269 = vrot.lane.b32.xlu0 %v711, 32
        %v2270 = vpop.permute.xlu0 %2269
        %2271 = vrot.lane.b32.xlu0 %v712, 32
        %v2272 = vpop.permute.xlu0 %2271
        %v2274 = vsel %vm717, %v2270, 0
        %v2277 = vsel %vm717, %v2272, 0
        %2279 = vmatprep.subr.bf16.mxu0 0
        %2280 = vmatpush1.bf16.xpose.msra.mxu0 0
        %2281 = vmatprep.subr.bf16.mxu0 0
        %2282 = vmatpush1.bf16.xpose.msra.mxu0 0
        %2283 = vmatprep.subr.bf16.mxu0 0
        %2284 = vmatpush1.bf16.xpose.msra.mxu0 0
        %2285 = vmatprep.subr.bf16.mxu0 0
        %2286 = vmatpush1.bf16.xpose.msra.mxu0 0
        %2287 = vmatprep.subr.bf16.mxu0 0
        %2288 = vmatpush1.bf16.xpose.msra.mxu0 0
        %2289 = vmatprep.subr.bf16.mxu0 0
        %2290 = vmatpush1.bf16.xpose.msra.mxu0 0
        %2291 = vmatprep.subr.bf16.mxu0 0
        %2292 = vmatpush1.bf16.xpose.msra.mxu0 0
        %2293 = vmatprep.subr.bf16.mxu0 0
        %2294 = vmatpush1.bf16.xpose.msra.mxu0 %v2277
        %2295 = vmatprep.subr.bf16.mxu0 0
        %2296 = vmatpush2.bf16.xpose.msra.mxu0 0
        %2297 = vmatprep.subr.bf16.mxu0 0
        %2298 = vmatpush2.bf16.xpose.msra.mxu0 0
        %2299 = vmatprep.subr.bf16.mxu0 0
        %2300 = vmatpush2.bf16.xpose.msra.mxu0 0
        %2301 = vmatprep.subr.bf16.mxu0 0
        %2302 = vmatpush2.bf16.xpose.msra.mxu0 0
        %2303 = vmatprep.subr.bf16.mxu0 0
        %2304 = vmatpush2.bf16.xpose.msra.mxu0 0
        %2305 = vmatprep.subr.bf16.mxu0 0
        %2306 = vmatpush2.bf16.xpose.msra.mxu0 0
        %2307 = vmatprep.subr.bf16.mxu0 0
        %2308 = vmatpush2.bf16.xpose.msra.mxu0 0
        %2309 = vmatprep.subr.bf16.mxu0 0
        %2310 = vmatpush2.bf16.xpose.msra.mxu0 0
        %2311 = vmatprep.mubr.bf16.mxu0 0
        %2312 = vmatmul.mubr.bf16.gmra.mxu0 %v2274
        %v2313 = vpop.f32.mrf.mxu0
        %v2314 = vadd.f32 0.0, %v2313
        %v2315 = vpop.f32.mrf.mxu0
        %v2316 = vpop.f32.mrf.mxu0
        %v2317 = vadd.f32 0.0, %v2316
        %v2318 = vpop.f32.mrf.mxu0
        %2319 = vdwg.mxu0
        %2320 = vrot.lane.b32.xlu0 %v714, 32
        %v2321 = vpop.permute.xlu0 %2320
        %2322 = vrot.lane.b32.xlu0 %v715, 32
        %v2323 = vpop.permute.xlu0 %2322
        %v2325 = vsel %vm717, %v2321, 0
        %v2328 = vsel %vm717, %v2323, 0
        %2330 = vmatprep.subr.bf16.mxu0 0
        %2331 = vmatpush1.bf16.xpose.msra.mxu0 0
        %2332 = vmatprep.subr.bf16.mxu0 0
        %2333 = vmatpush1.bf16.xpose.msra.mxu0 0
        %2334 = vmatprep.subr.bf16.mxu0 0
        %2335 = vmatpush1.bf16.xpose.msra.mxu0 0
        %2336 = vmatprep.subr.bf16.mxu0 0
        %2337 = vmatpush1.bf16.xpose.msra.mxu0 0
        %2338 = vmatprep.subr.bf16.mxu0 0
        %2339 = vmatpush1.bf16.xpose.msra.mxu0 0
        %2340 = vmatprep.subr.bf16.mxu0 0
        %2341 = vmatpush1.bf16.xpose.msra.mxu0 0
        %2342 = vmatprep.subr.bf16.mxu0 0
        %2343 = vmatpush1.bf16.xpose.msra.mxu0 0
        %2344 = vmatprep.subr.bf16.mxu0 0
        %2345 = vmatpush1.bf16.xpose.msra.mxu0 %v2328
        %2346 = vmatprep.subr.bf16.mxu0 0
        %2347 = vmatpush2.bf16.xpose.msra.mxu0 0
        %2348 = vmatprep.subr.bf16.mxu0 0
        %2349 = vmatpush2.bf16.xpose.msra.mxu0 0
        %2350 = vmatprep.subr.bf16.mxu0 0
        %2351 = vmatpush2.bf16.xpose.msra.mxu0 0
        %2352 = vmatprep.subr.bf16.mxu0 0
        %2353 = vmatpush2.bf16.xpose.msra.mxu0 0
        %2354 = vmatprep.subr.bf16.mxu0 0
        %2355 = vmatpush2.bf16.xpose.msra.mxu0 0
        %2356 = vmatprep.subr.bf16.mxu0 0
        %2357 = vmatpush2.bf16.xpose.msra.mxu0 0
        %2358 = vmatprep.subr.bf16.mxu0 0
        %2359 = vmatpush2.bf16.xpose.msra.mxu0 0
        %2360 = vmatprep.subr.bf16.mxu0 0
        %2361 = vmatpush2.bf16.xpose.msra.mxu0 0
        %2362 = vmatprep.mubr.bf16.mxu0 0
        %2363 = vmatmul.mubr.bf16.gmra.mxu0 %v2325
        %v2364 = vpop.f32.mrf.mxu0
        %v2365 = vadd.f32 0.0, %v2364
        %v2366 = vpop.f32.mrf.mxu0
        %v2367 = vpop.f32.mrf.mxu0
        %v2368 = vadd.f32 0.0, %v2367
        %v2369 = vpop.f32.mrf.mxu0
        %2370 = vdwg.mxu0
        %v2371 = vsel %vm906, %v2212, -inf
        %2372 = vmax.xlane.f32.xlu0 %v2371
        %v2373 = vpop.xlane.xlu0 %2372
        %v2374 = vsel %vm906, %v2215, -inf
        %2375 = vmax.xlane.f32.xlu0 %v2374
        %v2376 = vpop.xlane.xlu0 %2375
        %v2377 = vsel %vm906, %v2263, -inf
        %2378 = vmax.xlane.f32.xlu0 %v2377
        %v2379 = vpop.xlane.xlu0 %2378
        %v2380 = vsel %vm906, %v2266, -inf
        %2381 = vmax.xlane.f32.xlu0 %v2380
        %v2382 = vpop.xlane.xlu0 %2381
        %v2383 = vsel %vm906, %v2314, -inf
        %2384 = vmax.xlane.f32.xlu0 %v2383
        %v2385 = vpop.xlane.xlu0 %2384
        %v2386 = vsel %vm906, %v2317, -inf
        %2387 = vmax.xlane.f32.xlu0 %v2386
        %v2388 = vpop.xlane.xlu0 %2387
        %v2389 = vsel %vm906, %v2365, -inf
        %2390 = vmax.xlane.f32.xlu0 %v2389
        %v2391 = vpop.xlane.xlu0 %2390
        %v2392 = vsel %vm906, %v2368, -inf
        %2393 = vmax.xlane.f32.xlu0 %v2392
        %v2394 = vpop.xlane.xlu0 %2393
        %v2395 = vsub.f32 %v2212, %v2373
        %v2396 = vsub.f32 %v2215, %v2376
        %v2397 = vsub.f32 %v2263, %v2379
        %v2398 = vsub.f32 %v2266, %v2382
        %v2399 = vsub.f32 %v2314, %v2385
        %v2400 = vsub.f32 %v2317, %v2388
        %v2401 = vsub.f32 %v2365, %v2391
        %v2402 = vsub.f32 %v2368, %v2394
        %v2403 = vmul.f32 %v2395, 1.442695
        %v2404 = vpow.pop %v2403
        %v2405 = vmul.f32 %v2396, 1.442695
        %v2406 = vpow.pop %v2405
        %v2407 = vmul.f32 %v2397, 1.442695
        %v2408 = vpow.pop %v2407
        %v2409 = vmul.f32 %v2398, 1.442695
        %v2410 = vpow.pop %v2409
        %v2411 = vmul.f32 %v2399, 1.442695
        %v2412 = vpow.pop %v2411
        %v2413 = vmul.f32 %v2400, 1.442695
        %v2414 = vpow.pop %v2413
        %v2415 = vmul.f32 %v2401, 1.442695
        %v2416 = vpow.pop %v2415
        %v2417 = vmul.f32 %v2402, 1.442695
        %v2418 = vpow.pop %v2417
        %v2419 = vsel %vm906, %v2404, 0.0
        %2420 = vadd.xlane.f32.xlu0 %v2419
        %v2421 = vpop.xlane.xlu0 %2420
        %v2422 = vsel %vm906, %v2406, 0.0
        %2423 = vadd.xlane.f32.xlu0 %v2422
        %v2424 = vpop.xlane.xlu0 %2423
        %v2425 = vsel %vm906, %v2408, 0.0
        %2426 = vadd.xlane.f32.xlu0 %v2425
        %v2427 = vpop.xlane.xlu0 %2426
        %v2428 = vsel %vm906, %v2410, 0.0
        %2429 = vadd.xlane.f32.xlu0 %v2428
        %v2430 = vpop.xlane.xlu0 %2429
        %v2431 = vsel %vm906, %v2412, 0.0
        %2432 = vadd.xlane.f32.xlu0 %v2431
        %v2433 = vpop.xlane.xlu0 %2432
        %v2434 = vsel %vm906, %v2414, 0.0
        %2435 = vadd.xlane.f32.xlu0 %v2434
        %v2436 = vpop.xlane.xlu0 %2435
        %v2437 = vsel %vm906, %v2416, 0.0
        %2438 = vadd.xlane.f32.xlu0 %v2437
        %v2439 = vpop.xlane.xlu0 %2438
        %v2440 = vsel %vm906, %v2418, 0.0
        %2441 = vadd.xlane.f32.xlu0 %v2440
        %v2442 = vpop.xlane.xlu0 %2441
        %v2443 = vrcp.pop %v2421
        %v2444 = vmul.f32 %v2404, %v2443
        %v2445 = vrcp.pop %v2424
        %v2446 = vmul.f32 %v2406, %v2445
        %v2447 = vrcp.pop %v2427
        %v2448 = vmul.f32 %v2408, %v2447
        %v2449 = vrcp.pop %v2430
        %v2450 = vmul.f32 %v2410, %v2449
        %v2451 = vrcp.pop %v2433
        %v2452 = vmul.f32 %v2412, %v2451
        %v2453 = vrcp.pop %v2436
        %v2454 = vmul.f32 %v2414, %v2453
        %v2455 = vrcp.pop %v2439
        %v2456 = vmul.f32 %v2416, %v2455
        %v2457 = vrcp.pop %v2442
        %v2458 = vmul.f32 %v2418, %v2457
        %v2459 = vpack.c.bf16 %v2446, %v2444
        %v2460 = vpack.c.bf16 %v2450, %v2448
        %v2461 = vpack.c.bf16 %v2454, %v2452
        %v2462 = vpack.c.bf16 %v2458, %v2456
        %2463 = vrot.lane.b32.xlu0 %v707, 32
        %v2464 = vpop.permute.xlu0 %2463
        %v2467 = vsel %vm906, %v2459, 0
        %2469 = vmatprep.subr.bf16.mxu0 0
        %2470 = vmatpush1.bf16.msra.mxu0 0
        %2471 = vmatprep.subr.bf16.mxu0 0
        %2472 = vmatpush1.bf16.msra.mxu0 0
        %2473 = vmatprep.subr.bf16.mxu0 0
        %2474 = vmatpush1.bf16.msra.mxu0 0
        %2475 = vmatprep.subr.bf16.mxu0 0
        %2476 = vmatpush1.bf16.msra.mxu0 0
        %2477 = vmatprep.subr.bf16.mxu0 0
        %2478 = vmatpush1.bf16.msra.mxu0 0
        %2479 = vmatprep.subr.bf16.mxu0 0
        %2480 = vmatpush1.bf16.msra.mxu0 0
        %2481 = vmatprep.subr.bf16.mxu0 0
        %2482 = vmatpush1.bf16.msra.mxu0 0
        %2483 = vmatprep.subr.bf16.mxu0 0
        %2484 = vmatpush1.bf16.msra.mxu0 %v2464
        %2485 = vmatprep.subr.bf16.mxu0 0
        %2486 = vmatpush2.bf16.msra.mxu0 0
        %2487 = vmatprep.subr.bf16.mxu0 0
        %2488 = vmatpush2.bf16.msra.mxu0 0
        %2489 = vmatprep.subr.bf16.mxu0 0
        %2490 = vmatpush2.bf16.msra.mxu0 0
        %2491 = vmatprep.subr.bf16.mxu0 0
        %2492 = vmatpush2.bf16.msra.mxu0 0
        %2493 = vmatprep.subr.bf16.mxu0 0
        %2494 = vmatpush2.bf16.msra.mxu0 0
        %2495 = vmatprep.subr.bf16.mxu0 0
        %2496 = vmatpush2.bf16.msra.mxu0 0
        %2497 = vmatprep.subr.bf16.mxu0 0
        %2498 = vmatpush2.bf16.msra.mxu0 0
        %2499 = vmatprep.subr.bf16.mxu0 0
        %2500 = vmatpush2.bf16.msra.mxu0 0
        %2501 = vmatprep.mubr.bf16.mxu0 0
        %2502 = vmatmul.mubr.bf16.gmra.mxu0 %v2467
        %v2503 = vpop.f32.mrf.mxu0
        %v2504 = vadd.f32 0.0, %v2503
        %v2505 = vpop.f32.mrf.mxu0
        %v2506 = vpop.f32.mrf.mxu0
        %v2507 = vadd.f32 0.0, %v2506
        %v2508 = vpop.f32.mrf.mxu0
        %2509 = vdwg.mxu0
        %2510 = vrot.lane.b32.xlu0 %v710, 32
        %v2511 = vpop.permute.xlu0 %2510
        %v2514 = vsel %vm906, %v2460, 0
        %2516 = vmatprep.subr.bf16.mxu0 0
        %2517 = vmatpush1.bf16.msra.mxu0 0
        %2518 = vmatprep.subr.bf16.mxu0 0
        %2519 = vmatpush1.bf16.msra.mxu0 0
        %2520 = vmatprep.subr.bf16.mxu0 0
        %2521 = vmatpush1.bf16.msra.mxu0 0
        %2522 = vmatprep.subr.bf16.mxu0 0
        %2523 = vmatpush1.bf16.msra.mxu0 0
        %2524 = vmatprep.subr.bf16.mxu0 0
        %2525 = vmatpush1.bf16.msra.mxu0 0
        %2526 = vmatprep.subr.bf16.mxu0 0
        %2527 = vmatpush1.bf16.msra.mxu0 0
        %2528 = vmatprep.subr.bf16.mxu0 0
        %2529 = vmatpush1.bf16.msra.mxu0 0
        %2530 = vmatprep.subr.bf16.mxu0 0
        %2531 = vmatpush1.bf16.msra.mxu0 %v2511
        %2532 = vmatprep.subr.bf16.mxu0 0
        %2533 = vmatpush2.bf16.msra.mxu0 0
        %2534 = vmatprep.subr.bf16.mxu0 0
        %2535 = vmatpush2.bf16.msra.mxu0 0
        %2536 = vmatprep.subr.bf16.mxu0 0
        %2537 = vmatpush2.bf16.msra.mxu0 0
        %2538 = vmatprep.subr.bf16.mxu0 0
        %2539 = vmatpush2.bf16.msra.mxu0 0
        %2540 = vmatprep.subr.bf16.mxu0 0
        %2541 = vmatpush2.bf16.msra.mxu0 0
        %2542 = vmatprep.subr.bf16.mxu0 0
        %2543 = vmatpush2.bf16.msra.mxu0 0
        %2544 = vmatprep.subr.bf16.mxu0 0
        %2545 = vmatpush2.bf16.msra.mxu0 0
        %2546 = vmatprep.subr.bf16.mxu0 0
        %2547 = vmatpush2.bf16.msra.mxu0 0
        %2548 = vmatprep.mubr.bf16.mxu0 0
        %2549 = vmatmul.mubr.bf16.gmra.mxu0 %v2514
        %v2550 = vpop.f32.mrf.mxu0
        %v2551 = vadd.f32 0.0, %v2550
        %v2552 = vpop.f32.mrf.mxu0
        %v2553 = vpop.f32.mrf.mxu0
        %v2554 = vadd.f32 0.0, %v2553
        %v2555 = vpop.f32.mrf.mxu0
        %2556 = vdwg.mxu0
        %2557 = vrot.lane.b32.xlu0 %v713, 32
        %v2558 = vpop.permute.xlu0 %2557
        %v2561 = vsel %vm906, %v2461, 0
        %2563 = vmatprep.subr.bf16.mxu0 0
        %2564 = vmatpush1.bf16.msra.mxu0 0
        %2565 = vmatprep.subr.bf16.mxu0 0
        %2566 = vmatpush1.bf16.msra.mxu0 0
        %2567 = vmatprep.subr.bf16.mxu0 0
        %2568 = vmatpush1.bf16.msra.mxu0 0
        %2569 = vmatprep.subr.bf16.mxu0 0
        %2570 = vmatpush1.bf16.msra.mxu0 0
        %2571 = vmatprep.subr.bf16.mxu0 0
        %2572 = vmatpush1.bf16.msra.mxu0 0
        %2573 = vmatprep.subr.bf16.mxu0 0
        %2574 = vmatpush1.bf16.msra.mxu0 0
        %2575 = vmatprep.subr.bf16.mxu0 0
        %2576 = vmatpush1.bf16.msra.mxu0 0
        %2577 = vmatprep.subr.bf16.mxu0 0
        %2578 = vmatpush1.bf16.msra.mxu0 %v2558
        %2579 = vmatprep.subr.bf16.mxu0 0
        %2580 = vmatpush2.bf16.msra.mxu0 0
        %2581 = vmatprep.subr.bf16.mxu0 0
        %2582 = vmatpush2.bf16.msra.mxu0 0
        %2583 = vmatprep.subr.bf16.mxu0 0
        %2584 = vmatpush2.bf16.msra.mxu0 0
        %2585 = vmatprep.subr.bf16.mxu0 0
        %2586 = vmatpush2.bf16.msra.mxu0 0
        %2587 = vmatprep.subr.bf16.mxu0 0
        %2588 = vmatpush2.bf16.msra.mxu0 0
        %2589 = vmatprep.subr.bf16.mxu0 0
        %2590 = vmatpush2.bf16.msra.mxu0 0
        %2591 = vmatprep.subr.bf16.mxu0 0
        %2592 = vmatpush2.bf16.msra.mxu0 0
        %2593 = vmatprep.subr.bf16.mxu0 0
        %2594 = vmatpush2.bf16.msra.mxu0 0
        %2595 = vmatprep.mubr.bf16.mxu0 0
        %2596 = vmatmul.mubr.bf16.gmra.mxu0 %v2561
        %v2597 = vpop.f32.mrf.mxu0
        %v2598 = vadd.f32 0.0, %v2597
        %v2599 = vpop.f32.mrf.mxu0
        %v2600 = vpop.f32.mrf.mxu0
        %v2601 = vadd.f32 0.0, %v2600
        %v2602 = vpop.f32.mrf.mxu0
        %2603 = vdwg.mxu0
        %2604 = vrot.lane.b32.xlu0 %v716, 32
        %v2605 = vpop.permute.xlu0 %2604
        %v2608 = vsel %vm906, %v2462, 0
        %2610 = vmatprep.subr.bf16.mxu0 0
        %2611 = vmatpush1.bf16.msra.mxu0 0
        %2612 = vmatprep.subr.bf16.mxu0 0
        %2613 = vmatpush1.bf16.msra.mxu0 0
        %2614 = vmatprep.subr.bf16.mxu0 0
        %2615 = vmatpush1.bf16.msra.mxu0 0
        %2616 = vmatprep.subr.bf16.mxu0 0
        %2617 = vmatpush1.bf16.msra.mxu0 0
        %2618 = vmatprep.subr.bf16.mxu0 0
        %2619 = vmatpush1.bf16.msra.mxu0 0
        %2620 = vmatprep.subr.bf16.mxu0 0
        %2621 = vmatpush1.bf16.msra.mxu0 0
        %2622 = vmatprep.subr.bf16.mxu0 0
        %2623 = vmatpush1.bf16.msra.mxu0 0
        %2624 = vmatprep.subr.bf16.mxu0 0
        %2625 = vmatpush1.bf16.msra.mxu0 %v2605
        %2626 = vmatprep.subr.bf16.mxu0 0
        %2627 = vmatpush2.bf16.msra.mxu0 0
        %2628 = vmatprep.subr.bf16.mxu0 0
        %2629 = vmatpush2.bf16.msra.mxu0 0
        %2630 = vmatprep.subr.bf16.mxu0 0
        %2631 = vmatpush2.bf16.msra.mxu0 0
        %2632 = vmatprep.subr.bf16.mxu0 0
        %2633 = vmatpush2.bf16.msra.mxu0 0
        %2634 = vmatprep.subr.bf16.mxu0 0
        %2635 = vmatpush2.bf16.msra.mxu0 0
        %2636 = vmatprep.subr.bf16.mxu0 0
        %2637 = vmatpush2.bf16.msra.mxu0 0
        %2638 = vmatprep.subr.bf16.mxu0 0
        %2639 = vmatpush2.bf16.msra.mxu0 0
        %2640 = vmatprep.subr.bf16.mxu0 0
        %2641 = vmatpush2.bf16.msra.mxu0 0
        %2642 = vmatprep.mubr.bf16.mxu0 0
        %2643 = vmatmul.mubr.bf16.gmra.mxu0 %v2608
        %v2644 = vpop.f32.mrf.mxu0
        %v2645 = vadd.f32 0.0, %v2644
        %v2646 = vpop.f32.mrf.mxu0
        %v2647 = vpop.f32.mrf.mxu0
        %v2648 = vadd.f32 0.0, %v2647
        %v2649 = vpop.f32.mrf.mxu0
        %2650 = vdwg.mxu0
        %v2651 = vpack.c.bf16 %v2507, %v2504
        %v2652 = vpack.c.bf16 %v2554, %v2551
        %v2653 = vpack.c.bf16 %v2601, %v2598
        %v2654 = vpack.c.bf16 %v2648, %v2645
        %2659 = vrot.lane.b32.xlu0 %v1675, 32
        %v2660 = vpop.permute.xlu0 %2659
        %2661 = vrot.lane.b32.xlu0 %v1676, 32
        %v2662 = vpop.permute.xlu0 %2661
        %2663 = vrot.lane.b32.xlu0 %v1677, 32
        %v2664 = vpop.permute.xlu0 %2663
        %2665 = vrot.lane.b32.xlu0 %v1678, 32
        %v2666 = vpop.permute.xlu0 %2665
        %2671 = vrot.lane.b32.xlu0 %v2163, 64
        %v2672 = vpop.permute.xlu0 %2671
        %2673 = vrot.lane.b32.xlu0 %v2164, 64
        %v2674 = vpop.permute.xlu0 %2673
        %2675 = vrot.lane.b32.xlu0 %v2165, 64
        %v2676 = vpop.permute.xlu0 %2675
        %2677 = vrot.lane.b32.xlu0 %v2166, 64
        %v2678 = vpop.permute.xlu0 %2677
        %2683 = vrot.lane.b32.xlu0 %v2651, 96
        %v2684 = vpop.permute.xlu0 %2683
        %2685 = vrot.lane.b32.xlu0 %v2652, 96
        %v2686 = vpop.permute.xlu0 %2685
        %2687 = vrot.lane.b32.xlu0 %v2653, 96
        %v2688 = vpop.permute.xlu0 %2687
        %2689 = vrot.lane.b32.xlu0 %v2654, 96
        %v2690 = vpop.permute.xlu0 %2689
        %v2693 = vsel %vm717, %v1175, %v2660
        %v2696 = vsel %vm717, %v1176, %v2662
        %v2699 = vsel %vm717, %v1177, %v2664
        %v2702 = vsel %vm717, %v1178, %v2666
        %vm2703 = vcmask 523264
        %v2705 = vsel %vm2703, %v2693, %v2672
        %v2707 = vsel %vm2703, %v2696, %v2674
        %v2709 = vsel %vm2703, %v2699, %v2676
        %v2711 = vsel %vm2703, %v2702, %v2678
        %vm2712 = vcmask 785408
        %v2714 = vsel %vm2712, %v2705, %v2684
        %v2717 = vsel %vm2712, %v2707, %v2686
        %v2720 = vsel %vm2712, %v2709, %v2688
        %v2723 = vsel %vm2712, %v2711, %v2690
        %v2725 = vld [vmem:[#allocation7] sm:$0xf]
        %v2726 = vld [vmem:[#allocation7 + $0x4] sm:$0xf]
        %v2727 = vld [vmem:[#allocation7 + $0x8] sm:$0xf]
        %v2728 = vld [vmem:[#allocation7 + $0xc] sm:$0xf]
        %v2729 = vld [vmem:[#allocation7 + $0x10] sm:$0xf]
        %v2730 = vld [vmem:[#allocation7 + $0x14] sm:$0xf]
        %v2731 = vld [vmem:[#allocation7 + $0x18] sm:$0xf]
        %v2732 = vld [vmem:[#allocation7 + $0x1c] sm:$0xf]
        %v2733 = vld [vmem:[#allocation7 + $0x20] sm:$0xf]
        %v2734 = vld [vmem:[#allocation7 + $0x24] sm:$0xf]
        %v2735 = vld [vmem:[#allocation7 + $0x28] sm:$0xf]
        %v2736 = vld [vmem:[#allocation7 + $0x2c] sm:$0xf]
        %v2737 = vld [vmem:[#allocation7 + $0x30] sm:$0xf]
        %v2738 = vld [vmem:[#allocation7 + $0x34] sm:$0xf]
        %v2739 = vld [vmem:[#allocation7 + $0x38] sm:$0xf]
        %v2740 = vld [vmem:[#allocation7 + $0x3c] sm:$0xf]
        %v2757 = vunpack.c.l.b16 %v2725
        %v2758 = vunpack.c.l.b16 %v2726
        %v2759 = vunpack.c.l.b16 %v2727
        %v2760 = vunpack.c.l.b16 %v2728
        %v2761 = vunpack.c.l.b16 %v2729
        %v2762 = vunpack.c.l.b16 %v2730
        %v2763 = vunpack.c.l.b16 %v2731
        %v2764 = vunpack.c.l.b16 %v2732
        %v2765 = vunpack.c.l.b16 %v2733
        %v2766 = vunpack.c.l.b16 %v2734
        %v2767 = vunpack.c.l.b16 %v2735
        %v2768 = vunpack.c.l.b16 %v2736
        %v2769 = vunpack.c.l.b16 %v2737
        %v2770 = vunpack.c.l.b16 %v2738
        %v2771 = vunpack.c.l.b16 %v2739
        %v2772 = vunpack.c.l.b16 %v2740
        %v2773 = vpack.c.b16 %v2758, %v2757
        %v2774 = vpack.c.b16 %v2760, %v2759
        %v2775 = vpack.c.b16 %v2762, %v2761
        %v2776 = vpack.c.b16 %v2764, %v2763
        %v2777 = vpack.c.b16 %v2766, %v2765
        %v2778 = vpack.c.b16 %v2768, %v2767
        %v2779 = vpack.c.b16 %v2770, %v2769
        %v2780 = vpack.c.b16 %v2772, %v2771
        %2789 = vmatprep.subr.bf16.mxu0 0
        %2790 = vmatpush1.bf16.msra.mxu0 %v2780
        %2791 = vmatprep.subr.bf16.mxu0 0
        %2792 = vmatpush1.bf16.msra.mxu0 %v2779
        %2793 = vmatprep.subr.bf16.mxu0 0
        %2794 = vmatpush1.bf16.msra.mxu0 %v2778
        %2795 = vmatprep.subr.bf16.mxu0 0
        %2796 = vmatpush1.bf16.msra.mxu0 %v2777
        %2797 = vmatprep.subr.bf16.mxu0 0
        %2798 = vmatpush1.bf16.msra.mxu0 %v2776
        %2799 = vmatprep.subr.bf16.mxu0 0
        %2800 = vmatpush1.bf16.msra.mxu0 %v2775
        %2801 = vmatprep.subr.bf16.mxu0 0
        %2802 = vmatpush1.bf16.msra.mxu0 %v2774
        %2803 = vmatprep.subr.bf16.mxu0 0
        %2804 = vmatpush1.bf16.msra.mxu0 %v2773
        %2805 = vmatprep.subr.bf16.mxu0 0
        %2806 = vmatpush2.bf16.msra.mxu0 0
        %2807 = vmatprep.subr.bf16.mxu0 0
        %2808 = vmatpush2.bf16.msra.mxu0 0
        %2809 = vmatprep.subr.bf16.mxu0 0
        %2810 = vmatpush2.bf16.msra.mxu0 0
        %2811 = vmatprep.subr.bf16.mxu0 0
        %2812 = vmatpush2.bf16.msra.mxu0 0
        %2813 = vmatprep.subr.bf16.mxu0 0
        %2814 = vmatpush2.bf16.msra.mxu0 0
        %2815 = vmatprep.subr.bf16.mxu0 0
        %2816 = vmatpush2.bf16.msra.mxu0 0
        %2817 = vmatprep.subr.bf16.mxu0 0
        %2818 = vmatpush2.bf16.msra.mxu0 0
        %2819 = vmatprep.subr.bf16.mxu0 0
        %2820 = vmatpush2.bf16.msra.mxu0 0
        %2821 = vmatprep.mubr.bf16.mxu0 0
        %2822 = vmatmul.mubr.bf16.gmra.mxu0 %v2714
        %v2823 = vpop.f32.mrf.mxu0
        %v2824 = vadd.f32 0.0, %v2823
        %v2825 = vpop.f32.mrf.mxu0
        %v2826 = vpop.f32.mrf.mxu0
        %v2827 = vadd.f32 0.0, %v2826
        %v2828 = vpop.f32.mrf.mxu0
        %2829 = vmatprep.mubr.bf16.mxu0 0
        %2830 = vmatmul.mubr.bf16.gmra.mxu0 %v2717
        %v2831 = vpop.f32.mrf.mxu0
        %v2832 = vadd.f32 0.0, %v2831
        %v2833 = vpop.f32.mrf.mxu0
        %v2834 = vpop.f32.mrf.mxu0
        %v2835 = vadd.f32 0.0, %v2834
        %v2836 = vpop.f32.mrf.mxu0
        %2837 = vmatprep.mubr.bf16.mxu0 0
        %2838 = vmatmul.mubr.bf16.gmra.mxu0 %v2720
        %v2839 = vpop.f32.mrf.mxu0
        %v2840 = vadd.f32 0.0, %v2839
        %v2841 = vpop.f32.mrf.mxu0
        %v2842 = vpop.f32.mrf.mxu0
        %v2843 = vadd.f32 0.0, %v2842
        %v2844 = vpop.f32.mrf.mxu0
        %2845 = vmatprep.mubr.bf16.mxu0 0
        %2846 = vmatmul.mubr.bf16.gmra.mxu0 %v2723
        %v2847 = vpop.f32.mrf.mxu0
        %v2848 = vadd.f32 0.0, %v2847
        %v2849 = vpop.f32.mrf.mxu0
        %v2850 = vpop.f32.mrf.mxu0
        %v2851 = vadd.f32 0.0, %v2850
        %v2852 = vpop.f32.mrf.mxu0
        %2853 = vdwg.mxu0
        %2854 = vst [vmem:[%s272] sm:$0xff] %v2824
        %2855 = vst [vmem:[%s272 + $0x8] sm:$0xff] %v2827
        %2856 = vst [vmem:[%s272 + $0x10] sm:$0xff] %v2832
        %2857 = vst [vmem:[%s272 + $0x18] sm:$0xff] %v2835
        %2858 = vst [vmem:[%s272 + $0x20] sm:$0xff] %v2840
        %2859 = vst [vmem:[%s272 + $0x28] sm:$0xff] %v2843
        %2860 = vst [vmem:[%s272 + $0x30] sm:$0xff] %v2848
        %2861 = vst [vmem:[%s272 + $0x38] sm:$0xff] %v2851
        %s2862 = sand.u32 %s141, 1
        %s2863 = scalar_lea.sflag [#allocation4], %s2862
        %s2864 = sand.u32 %s141, 1
        %s2865 = smul.addr %s2864, 64
        %s2866 = scalar_lea.vmem [#allocation8], %s2865
        // Predicated region
        $region53: #{tpu_custom_call.1} parent=39 // pred_check
          %p2867 = pneg %p151
        $region54: #{tpu_custom_call.1} parent=39 // pred_check_branch
          %2869 = sbr.rel (%p2867) target = $region56
        $region55: #{tpu_custom_call.1} parent=39 // pred_region
          %s2870 = smul.u32 4, %s23
          %s2872 = ssub.s32 1024, 1024
          %2873 = vsyncadd %s2863, %s2872
          %s2874 = smul.addr %s2870, 2
          %s2875 = smul.addr %s2874, 128
          %s2876 = scalar_lea.hbm %s5, %s2875
          %s2877 = sshll.u32 %s2866, 4
          %s2878 = int_to_ptr.vmem [resolvable:$true] %s2877
          %2883 = dma.vmem_to_hbm [thread:$0]  %s2878, 1024, %s2876, %s2863, 128, 128, 8
        $region56: #{tpu_custom_call.1} parent=39 // pred_fallthru
          _
      $region40: #{tpu_custom_call.1} parent=5 // pred_fallthru
        _
      %p2884 = scmp.le.s32.totalorder 2, %s18
      // Predicated region
      $region57: #{tpu_custom_call.1} parent=5 // pred_check
        %p2885 = pneg %p2884
      $region58: #{tpu_custom_call.1} parent=5 // pred_check_branch
        %2887 = sbr.rel (%p2885) target = $region60
      $region59: #{tpu_custom_call.1} parent=5 // pred_region
        %s2888 = ssub.s32 %s18, 2
        // Predicated region
        $region61: #{tpu_custom_call.1} parent=59 // pred_check
          %p2889 = pneg %p157
        $region62: #{tpu_custom_call.1} parent=59 // pred_check_branch
          %2891 = sbr.rel (%p2889) target = $region64
        $region63: #{tpu_custom_call.1} parent=59 // pred_region
          %s2892 = sand.u32 %s142, 1
          %s2893 = scalar_lea.sflag [#allocation4], %s2892
          %s2894 = sand.u32 %s142, 1
          %s2895 = smul.addr %s2894, 64
          %s2896 = scalar_lea.vmem [#allocation8], %s2895
          %2897 = dma.done %s2893, 1024
        $region64: #{tpu_custom_call.1} parent=59 // pred_fallthru
          _
      $region60: #{tpu_custom_call.1} parent=5 // pred_fallthru
        _
    $region6: #{tpu_custom_call.1} parent=1 // loop_footer
      %s22 = sadd.s32 1, %s18
    $region7: #{tpu_custom_call.1} parent=1 // loop_footer_branch
      %17 = sbr.rel target = $region3
    $region8: #{tpu_custom_call.1} parent=1 // loop_exit
      _
    %2898 = vsyncpa [#allocation3], 1
    %s2899 = scalar_lea.sflag [#allocation3], 1
    %2900 = vsyncpa %s2899, 1
    %2901 = vsyncpa [#allocation6], 1
    %2902 = vsyncpa [#allocation4], 1
    %s2903 = scalar_lea.sflag [#allocation4], 1
    %2904 = vsyncpa %s2903, 1

</llo_original>
